<compile_context>
chip_gen: v6e
topology: v6e:2x2x1
jax: 0.10.0
libtpu: 0.0.40
codegen_flags: <defaults>
</compile_context>

<pallas_src>
import functools

import jax
import jax.numpy as jnp
from jax.experimental import pallas as pl
from jax.experimental.pallas import tpu as pltpu  # noqa: F401  (kept for parity / future CompilerParams)

# ---------------- config (small synthetic BERT) ----------------
VOCAB = 128
HIDDEN = 32
N_LAYERS = 2
N_HEADS = 2
HEAD_DIM = HIDDEN // N_HEADS
INTER = 64
MAX_POS = 16
PAD_ID = 0            # bert-base-chinese pad_token_id
LN_EPS = 1e-12
B, S = 2, 8
M = B * S


# ---------------- single fused Pallas kernel ----------------
def _fused_kernel(tok_ref, attn_bias_ref, embw_ref, embmisc_ref,
                  wA_ref, wB_ref, bias_ref, wvb_ref, out_ref):
    f32 = jnp.float32

    def layernorm(x, g, b):
        mu = jnp.mean(x, axis=-1, keepdims=True)
        var = jnp.mean((x - mu) ** 2, axis=-1, keepdims=True)
        return (x - mu) * jax.lax.rsqrt(var + LN_EPS) * g + b

    ids = tok_ref[:, 0:1]       # (M, 1) int32
    labels = tok_ref[:, 1:2]    # (M, 1) int32
    amask = tok_ref[:, 2:3]     # (M, 1) int32 (1 = real token, 0 = pad)

    vcol = jax.lax.broadcasted_iota(jnp.int32, (M, VOCAB), 1)            # (M, 128)

    # ---- fused embedding lookup: one-hot (M,128) @ word_emb (128,32) on the MXU ----
    onehot = (vcol == ids).astype(f32)
    h = jnp.dot(onehot, embw_ref[...], preferred_element_type=f32)       # (M, H)
    h = h + embmisc_ref[0:M, :]                                          # + pos + token-type offsets
    h = layernorm(h, embmisc_ref[M:M + 1, :], embmisc_ref[M + 1:M + 2, :])

    # layer-invariant additive attention bias (padding + block-diagonal batch separation)
    attn_bias = attn_bias_ref[...]                                       # (M, M)
    scale = 1.0 / (HEAD_DIM ** 0.5)

    for l in range(N_LAYERS):
        wqkv = wA_ref[l, :, 0:3 * HIDDEN]                                # (H, 3H)
        wo = wA_ref[l, :, 3 * HIDDEN:4 * HIDDEN]                         # (H, H)
        wi = wA_ref[l, :, 4 * HIDDEN:4 * HIDDEN + INTER]                 # (H, INTER)

        # fused QKV projection: one (M,H) @ (H,3H) matmul
        qkv = jnp.dot(h, wqkv, preferred_element_type=f32) + bias_ref[l, 0:1, :]

        # attention over the flattened token axis, per head; context folded into Wo per head
        attn_out = None
        for hh in range(N_HEADS):
            q = qkv[:, hh * HEAD_DIM:(hh + 1) * HEAD_DIM]
            k = qkv[:, HIDDEN + hh * HEAD_DIM:HIDDEN + (hh + 1) * HEAD_DIM]
            v = qkv[:, 2 * HIDDEN + hh * HEAD_DIM:2 * HIDDEN + (hh + 1) * HEAD_DIM]
            s = jax.lax.dot_general(q, k, (((1,), (1,)), ((), ())),
                                    preferred_element_type=f32) * scale + attn_bias
            s = s - jnp.max(s, axis=-1, keepdims=True)
            p = jnp.exp(s)
            p = p / jnp.sum(p, axis=-1, keepdims=True)
            ctx = jnp.dot(p, v, preferred_element_type=f32)              # (M, HEAD_DIM)
            proj = jnp.dot(ctx, wo[hh * HEAD_DIM:(hh + 1) * HEAD_DIM, :],
                           preferred_element_type=f32)                   # (M, H)
            attn_out = proj if attn_out is None else attn_out + proj
        attn_out = attn_out + bias_ref[l, 1:2, 0:HIDDEN]

        h = layernorm(attn_out + h, bias_ref[l, 2:3, 0:HIDDEN], bias_ref[l, 3:4, 0:HIDDEN])

        inter = jnp.dot(h, wi, preferred_element_type=f32) + bias_ref[l, 4:5, 0:INTER]
        c = 0.7978845608028654  # sqrt(2/pi)  (tanh-GELU approximation)
        inter = 0.5 * inter * (1.0 + jnp.tanh(c * (inter + 0.044715 * inter * inter * inter)))
        ffn_out = jnp.dot(inter, wB_ref[l], preferred_element_type=f32) + bias_ref[l, 5:6, 0:HIDDEN]
        h = layernorm(ffn_out + h, bias_ref[l, 6:7, 0:HIDDEN], bias_ref[l, 7:8, 0:HIDDEN])

    # ---- vocab head (lane-dense: V = 128) ----
    logits = (jnp.dot(h, wvb_ref[0:HIDDEN, :], preferred_element_type=f32)
              + wvb_ref[HIDDEN:HIDDEN + 1, :])                           # (M, V)

    # argmax over vocab (first max index, like torch.argmax) + masked_fill(pad)
    maxv = jnp.max(logits, axis=-1, keepdims=True)
    pred = jnp.min(jnp.where(logits == maxv, vcol, VOCAB), axis=-1, keepdims=True)
    pred = jnp.where(amask == 0, PAD_ID, pred)                           # (M, 1) int32

    # per-token cross entropy with ignore_index == pad_id, reduced in-kernel
    lse = maxv + jnp.log(jnp.sum(jnp.exp(logits - maxv), axis=-1, keepdims=True))
    lab_logit = jnp.sum(jnp.where(vcol == labels, logits, 0.0), axis=-1, keepdims=True)
    valid = (labels != PAD_ID).astype(f32)
    nll = (lse - lab_logit) * valid
    sum_nll = jnp.sum(nll, axis=0, keepdims=True)                        # (1, 1)
    sum_valid = jnp.sum(valid, axis=0, keepdims=True)                    # (1, 1)

    # single lane-dense (M, 128) output slab: col 0 = pred, [0,1] = sum_nll, [0,2] = sum_valid
    rrow = jax.lax.broadcasted_iota(jnp.int32, (M, VOCAB), 0)
    out = jnp.where(vcol == 0, pred.astype(f32), 0.0)
    out = out + jnp.where((rrow == 0) & (vcol == 1), sum_nll, 0.0)
    out = out + jnp.where((rrow == 0) & (vcol == 2), sum_valid, 0.0)
    out_ref[...] = out


# ---------------- parameters (deterministic synthetic init) ----------------
def init_params(key):
    keys = jax.random.split(key, 8 + N_LAYERS)

    def normal(k, shape):
        return (0.02 * jax.random.normal(k, shape)).astype(jnp.float32)

    params = {
        "word_emb": normal(keys[0], (VOCAB, HIDDEN)),
        "pos_emb": normal(keys[1], (MAX_POS, HIDDEN)),
        "type_emb": normal(keys[2], (2, HIDDEN)),
        "emb_ln_g": jnp.ones((HIDDEN,), jnp.float32),
        "emb_ln_b": jnp.zeros((HIDDEN,), jnp.float32),
        "w_vocab": normal(keys[3], (HIDDEN, VOCAB)),
        "b_vocab": jnp.zeros((VOCAB,), jnp.float32),
        "layers": [],
    }
    for layer_idx in range(N_LAYERS):
        lk = jax.random.split(keys[8 + layer_idx], 8)
        params["layers"].append({
            "wq": normal(lk[0], (HIDDEN, HIDDEN)), "bq": jnp.zeros((HIDDEN,), jnp.float32),
            "wk": normal(lk[1], (HIDDEN, HIDDEN)), "bk": jnp.zeros((HIDDEN,), jnp.float32),
            "wv": normal(lk[2], (HIDDEN, HIDDEN)), "bv": jnp.zeros((HIDDEN,), jnp.float32),
            "wo": normal(lk[3], (HIDDEN, HIDDEN)), "bo": jnp.zeros((HIDDEN,), jnp.float32),
            "ln1_g": jnp.ones((HIDDEN,), jnp.float32), "ln1_b": jnp.zeros((HIDDEN,), jnp.float32),
            "wi": normal(lk[4], (HIDDEN, INTER)), "bi": jnp.zeros((INTER,), jnp.float32),
            "wo2": normal(lk[5], (INTER, HIDDEN)), "bo2": jnp.zeros((HIDDEN,), jnp.float32),
            "ln2_g": jnp.ones((HIDDEN,), jnp.float32), "ln2_b": jnp.zeros((HIDDEN,), jnp.float32),
        })
    return params


def _pack_weights(params):
    """Pack the many small parameters into a handful of VMEM slabs (fewer DMA descriptors)."""
    layers = params["layers"]

    # slab A: [Wqkv | Wo | Wi] per layer -> (L, 32, 192)
    wA = jnp.stack([jnp.concatenate(
        [jnp.concatenate([l["wq"], l["wk"], l["wv"]], axis=1), l["wo"], l["wi"]], axis=1)
        for l in layers])
    # slab B: Wo2 per layer -> (L, 64, 32)
    wB = jnp.stack([l["wo2"] for l in layers])

    def row(vec, width=3 * HIDDEN):
        return jnp.pad(vec, (0, width - vec.shape[0])).reshape(1, width)

    # bias / LayerNorm slab: 8 rows of width 96 per layer -> (L, 8, 96)
    biases = jnp.stack([jnp.concatenate([
        row(jnp.concatenate([l["bq"], l["bk"], l["bv"]])),
        row(l["bo"]), row(l["ln1_g"]), row(l["ln1_b"]),
        row(l["bi"]), row(l["bo2"]), row(l["ln2_g"]), row(l["ln2_b"])], axis=0)
        for l in layers])

    # emb-misc slab: rows 0..M-1 = (pos + token-type) offsets, row M = emb LN gamma, row M+1 = beta
    emboff = jnp.tile(params["pos_emb"][:S] + params["type_emb"][0][None, :], (B, 1))   # (M, H)
    embmisc = jnp.concatenate([emboff,
                               params["emb_ln_g"].reshape(1, HIDDEN),
                               params["emb_ln_b"].reshape(1, HIDDEN)], axis=0)          # (M+2, H)

    # vocab head slab: rows 0..31 = W_vocab, row 32 = b_vocab -> (33, 128)
    wvb = jnp.concatenate([params["w_vocab"], params["b_vocab"].reshape(1, VOCAB)], axis=0)

    return params["word_emb"], embmisc, wA, wB, biases, wvb


# ---------------- forward (mirrors SpellCheckBert.forward) ----------------
def spell_check_bert_forward(params, input_ids, attention_mask, labels=None):
    ids_flat = input_ids.reshape(M).astype(jnp.int32)
    amask_flat = attention_mask.reshape(M).astype(jnp.int32)
    labels_flat = (labels if labels is not None
                   else jnp.zeros((B, S), jnp.int32)).reshape(M).astype(jnp.int32)
    tok = jnp.stack([ids_flat, labels_flat, amask_flat], axis=1)                        # (M, 3)

    # layer-invariant additive attention bias over the flattened token axis:
    # block-diagonal (no cross-batch attention) + key-padding mask, BERT-style -1e4.
    rowb = jnp.arange(M, dtype=jnp.int32) // S
    same_batch = rowb[:, None] == rowb[None, :]
    key_keep = amask_flat[None, :] > 0
    attn_bias = jnp.where(same_batch & key_keep, 0.0, -10000.0).astype(jnp.float32)     # (M, M)

    packed = _pack_weights(params)

    out = pl.pallas_call(
        _fused_kernel,
        out_shape=jax.ShapeDtypeStruct((M, VOCAB), jnp.float32),
    )(tok, attn_bias, *packed)

    predictions = out[:, 0].astype(jnp.int32).reshape(B, S)
    if labels is not None:
        # CE mean over non-pad tokens (guard against all-pad batch producing NaN)
        loss = out[0, 1] / jnp.maximum(out[0, 2], 1.0)
    else:
        loss = jnp.float32(0.0)
    return {"loss": loss, "predictions": predictions}


if __name__ == "__main__":
    key = jax.random.PRNGKey(0)
    pkey, ikey, lkey = jax.random.split(key, 3)
    params = init_params(pkey)

    attention_mask = jnp.array([[1] * S, [1] * 5 + [0] * 3], dtype=jnp.int32)           # (B, S)
    input_ids = jax.random.randint(ikey, (B, S), 1, VOCAB, dtype=jnp.int32)
    input_ids = jnp.where(attention_mask == 0, PAD_ID, input_ids)
    labels = jax.random.randint(lkey, (B, S), 1, VOCAB, dtype=jnp.int32)
    labels = jnp.where(attention_mask == 0, PAD_ID, labels)

    fwd = jax.jit(functools.partial(spell_check_bert_forward, params))
    out = fwd(input_ids, attention_mask, labels)
    jax.block_until_ready(out)

    assert out["predictions"].shape == (B, S) and out["predictions"].dtype == jnp.int32
    assert out["loss"].shape == () and bool(jnp.isfinite(out["loss"]))
    print("KERNEL_OK")
</pallas_src>

<mosaic_0001>
module attributes {stable_mosaic.version = 11 : i64} {
  func.func @_fused_kernel(%arg0: memref<16x3xi32, #tpu.memory_space<vmem>>, %arg1: memref<16x16xf32, #tpu.memory_space<vmem>>, %arg2: memref<128x32xf32, #tpu.memory_space<vmem>>, %arg3: memref<18x32xf32, #tpu.memory_space<vmem>>, %arg4: memref<2x32x192xf32, #tpu.memory_space<vmem>>, %arg5: memref<2x64x32xf32, #tpu.memory_space<vmem>>, %arg6: memref<2x8x96xf32, #tpu.memory_space<vmem>>, %arg7: memref<33x128xf32, #tpu.memory_space<vmem>>, %arg8: memref<16x128xf32, #tpu.memory_space<vmem>>) attributes {dimension_semantics = [], scalar_prefetch = 0 : i64, scratch_operands = 0 : i64, tpu.core_type = #tpu.core_type<tc>} {
    %c0 = arith.constant 0 : index
    %c0_0 = arith.constant 0 : index
    %0 = vector.load %arg0[%c0, %c0_0] : memref<16x3xi32, #tpu.memory_space<vmem>>, vector<16x1xi32>
    %c0_1 = arith.constant 0 : index
    %c1 = arith.constant 1 : index
    %1 = vector.load %arg0[%c0_1, %c1] : memref<16x3xi32, #tpu.memory_space<vmem>>, vector<16x1xi32>
    %c0_2 = arith.constant 0 : index
    %c2 = arith.constant 2 : index
    %2 = vector.load %arg0[%c0_2, %c2] : memref<16x3xi32, #tpu.memory_space<vmem>>, vector<16x1xi32>
    %3 = tpu.iota {dimensions = array<i32: 1>} : vector<16x128xi32>
    %4 = vector.broadcast %0 : vector<16x1xi32> to vector<16x128xi32>
    %5 = arith.cmpi eq, %3, %4 : vector<16x128xi32>
    %6 = arith.extui %5 : vector<16x128xi1> to vector<16x128xi32>
    %7 = arith.sitofp %6 : vector<16x128xi32> to vector<16x128xf32>
    %c0_3 = arith.constant 0 : index
    %c0_4 = arith.constant 0 : index
    %8 = vector.load %arg2[%c0_3, %c0_4] : memref<128x32xf32, #tpu.memory_space<vmem>>, vector<128x32xf32>
    %cst = arith.constant dense<0.000000e+00> : vector<16x32xf32>
    %9 = tpu.matmul %7, %8, %cst {dimension_numbers = #tpu.dot_dimension_numbers<[1], [0], [0], [1], [0, 0, 1, 1], [], []>} : vector<16x128xf32>, vector<128x32xf32>, vector<16x32xf32> -> vector<16x32xf32>
    %c0_5 = arith.constant 0 : index
    %c0_6 = arith.constant 0 : index
    %10 = vector.load %arg3[%c0_5, %c0_6] : memref<18x32xf32, #tpu.memory_space<vmem>>, vector<16x32xf32>
    %11 = arith.addf %9, %10 : vector<16x32xf32>
    %c16 = arith.constant 16 : index
    %c0_7 = arith.constant 0 : index
    %12 = vector.load %arg3[%c16, %c0_7] : memref<18x32xf32, #tpu.memory_space<vmem>>, vector<1x32xf32>
    %c17 = arith.constant 17 : index
    %c0_8 = arith.constant 0 : index
    %13 = vector.load %arg3[%c17, %c0_8] : memref<18x32xf32, #tpu.memory_space<vmem>>, vector<1x32xf32>
    %cst_9 = arith.constant dense<0.000000e+00> : vector<16xf32>
    %14 = vector.multi_reduction <add>, %11, %cst_9 [1] : vector<16x32xf32> to vector<16xf32>
    %15 = vector.shape_cast %14 : vector<16xf32> to vector<16x1xf32>
    %cst_10 = arith.constant 3.200000e+01 : f32
    %16 = vector.broadcast %cst_10 : f32 to vector<16x1xf32>
    %17 = arith.divf %15, %16 : vector<16x1xf32>
    %18 = vector.broadcast %17 : vector<16x1xf32> to vector<16x32xf32>
    %19 = arith.subf %11, %18 : vector<16x32xf32>
    %20 = arith.mulf %19, %19 : vector<16x32xf32>
    %cst_11 = arith.constant dense<0.000000e+00> : vector<16xf32>
    %21 = vector.multi_reduction <add>, %20, %cst_11 [1] : vector<16x32xf32> to vector<16xf32>
    %22 = vector.shape_cast %21 : vector<16xf32> to vector<16x1xf32>
    %cst_12 = arith.constant 3.200000e+01 : f32
    %23 = vector.broadcast %cst_12 : f32 to vector<16x1xf32>
    %24 = arith.divf %22, %23 : vector<16x1xf32>
    %25 = vector.broadcast %17 : vector<16x1xf32> to vector<16x32xf32>
    %26 = arith.subf %11, %25 : vector<16x32xf32>
    %cst_13 = arith.constant 9.99999996E-13 : f32
    %27 = vector.broadcast %cst_13 : f32 to vector<16x1xf32>
    %28 = arith.addf %24, %27 : vector<16x1xf32>
    %29 = math.rsqrt %28 : vector<16x1xf32>
    %30 = vector.broadcast %29 : vector<16x1xf32> to vector<16x32xf32>
    %31 = arith.mulf %26, %30 : vector<16x32xf32>
    %32 = vector.broadcast %12 : vector<1x32xf32> to vector<16x32xf32>
    %33 = arith.mulf %31, %32 : vector<16x32xf32>
    %34 = vector.broadcast %13 : vector<1x32xf32> to vector<16x32xf32>
    %35 = arith.addf %33, %34 : vector<16x32xf32>
    %c0_14 = arith.constant 0 : index
    %c0_15 = arith.constant 0 : index
    %36 = vector.load %arg1[%c0_14, %c0_15] : memref<16x16xf32, #tpu.memory_space<vmem>>, vector<16x16xf32>
    %c0_16 = arith.constant 0 : index
    %c0_17 = arith.constant 0 : index
    %c0_18 = arith.constant 0 : index
    %37 = vector.load %arg4[%c0_16, %c0_17, %c0_18] : memref<2x32x192xf32, #tpu.memory_space<vmem>>, vector<1x32x96xf32>
    %38 = vector.shape_cast %37 : vector<1x32x96xf32> to vector<32x96xf32>
    %c0_19 = arith.constant 0 : index
    %c0_20 = arith.constant 0 : index
    %c96 = arith.constant 96 : index
    %39 = vector.load %arg4[%c0_19, %c0_20, %c96] : memref<2x32x192xf32, #tpu.memory_space<vmem>>, vector<1x32x32xf32>
    %40 = vector.shape_cast %39 : vector<1x32x32xf32> to vector<32x32xf32>
    %c0_21 = arith.constant 0 : index
    %c0_22 = arith.constant 0 : index
    %c128 = arith.constant 128 : index
    %41 = vector.load %arg4[%c0_21, %c0_22, %c128] : memref<2x32x192xf32, #tpu.memory_space<vmem>>, vector<1x32x64xf32>
    %42 = vector.shape_cast %41 : vector<1x32x64xf32> to vector<32x64xf32>
    %cst_23 = arith.constant dense<0.000000e+00> : vector<16x96xf32>
    %43 = tpu.matmul %35, %38, %cst_23 {dimension_numbers = #tpu.dot_dimension_numbers<[1], [0], [0], [1], [0, 0, 1, 1], [], []>} : vector<16x32xf32>, vector<32x96xf32>, vector<16x96xf32> -> vector<16x96xf32>
    %c0_24 = arith.constant 0 : index
    %c0_25 = arith.constant 0 : index
    %c0_26 = arith.constant 0 : index
    %44 = vector.load %arg6[%c0_24, %c0_25, %c0_26] : memref<2x8x96xf32, #tpu.memory_space<vmem>>, vector<1x1x96xf32>
    %45 = vector.shape_cast %44 : vector<1x1x96xf32> to vector<1x96xf32>
    %46 = vector.broadcast %45 : vector<1x96xf32> to vector<16x96xf32>
    %47 = arith.addf %43, %46 : vector<16x96xf32>
    %48 = vector.extract_strided_slice %47 {offsets = [0, 0], sizes = [16, 16], strides = [1, 1]} : vector<16x96xf32> to vector<16x16xf32>
    %49 = vector.extract_strided_slice %47 {offsets = [0, 32], sizes = [16, 16], strides = [1, 1]} : vector<16x96xf32> to vector<16x16xf32>
    %50 = vector.extract_strided_slice %47 {offsets = [0, 64], sizes = [16, 16], strides = [1, 1]} : vector<16x96xf32> to vector<16x16xf32>
    %cst_27 = arith.constant dense<0.000000e+00> : vector<16x16xf32>
    %51 = tpu.matmul %48, %49, %cst_27 {dimension_numbers = #tpu.dot_dimension_numbers<[1], [1], [0], [0], [0, 0, 1, 0], [], []>} : vector<16x16xf32>, vector<16x16xf32>, vector<16x16xf32> -> vector<16x16xf32>
    %cst_28 = arith.constant 2.500000e-01 : f32
    %52 = vector.broadcast %cst_28 : f32 to vector<16x16xf32>
    %53 = arith.mulf %51, %52 : vector<16x16xf32>
    %54 = arith.addf %53, %36 : vector<16x16xf32>
    %cst_29 = arith.constant dense<0xFF800000> : vector<16xf32>
    %55 = vector.multi_reduction <maximumf>, %54, %cst_29 [1] : vector<16x16xf32> to vector<16xf32>
    %56 = vector.shape_cast %55 : vector<16xf32> to vector<16x1xf32>
    %57 = vector.broadcast %56 : vector<16x1xf32> to vector<16x16xf32>
    %58 = arith.subf %54, %57 : vector<16x16xf32>
    %59 = math.exp %58 : vector<16x16xf32>
    %cst_30 = arith.constant dense<0.000000e+00> : vector<16xf32>
    %60 = vector.multi_reduction <add>, %59, %cst_30 [1] : vector<16x16xf32> to vector<16xf32>
    %61 = vector.shape_cast %60 : vector<16xf32> to vector<16x1xf32>
    %62 = vector.broadcast %61 : vector<16x1xf32> to vector<16x16xf32>
    %63 = arith.divf %59, %62 : vector<16x16xf32>
    %cst_31 = arith.constant dense<0.000000e+00> : vector<16x16xf32>
    %64 = tpu.matmul %63, %50, %cst_31 {dimension_numbers = #tpu.dot_dimension_numbers<[1], [0], [0], [1], [0, 0, 1, 1], [], []>} : vector<16x16xf32>, vector<16x16xf32>, vector<16x16xf32> -> vector<16x16xf32>
    %65 = vector.extract_strided_slice %40 {offsets = [0, 0], sizes = [16, 32], strides = [1, 1]} : vector<32x32xf32> to vector<16x32xf32>
    %cst_32 = arith.constant dense<0.000000e+00> : vector<16x32xf32>
    %66 = tpu.matmul %64, %65, %cst_32 {dimension_numbers = #tpu.dot_dimension_numbers<[1], [0], [0], [1], [0, 0, 1, 1], [], []>} : vector<16x16xf32>, vector<16x32xf32>, vector<16x32xf32> -> vector<16x32xf32>
    %67 = vector.extract_strided_slice %47 {offsets = [0, 16], sizes = [16, 16], strides = [1, 1]} : vector<16x96xf32> to vector<16x16xf32>
    %68 = vector.extract_strided_slice %47 {offsets = [0, 48], sizes = [16, 16], strides = [1, 1]} : vector<16x96xf32> to vector<16x16xf32>
    %69 = vector.extract_strided_slice %47 {offsets = [0, 80], sizes = [16, 16], strides = [1, 1]} : vector<16x96xf32> to vector<16x16xf32>
    %cst_33 = arith.constant dense<0.000000e+00> : vector<16x16xf32>
    %70 = tpu.matmul %67, %68, %cst_33 {dimension_numbers = #tpu.dot_dimension_numbers<[1], [1], [0], [0], [0, 0, 1, 0], [], []>} : vector<16x16xf32>, vector<16x16xf32>, vector<16x16xf32> -> vector<16x16xf32>
    %cst_34 = arith.constant 2.500000e-01 : f32
    %71 = vector.broadcast %cst_34 : f32 to vector<16x16xf32>
    %72 = arith.mulf %70, %71 : vector<16x16xf32>
    %73 = arith.addf %72, %36 : vector<16x16xf32>
    %cst_35 = arith.constant dense<0xFF800000> : vector<16xf32>
    %74 = vector.multi_reduction <maximumf>, %73, %cst_35 [1] : vector<16x16xf32> to vector<16xf32>
    %75 = vector.shape_cast %74 : vector<16xf32> to vector<16x1xf32>
    %76 = vector.broadcast %75 : vector<16x1xf32> to vector<16x16xf32>
    %77 = arith.subf %73, %76 : vector<16x16xf32>
    %78 = math.exp %77 : vector<16x16xf32>
    %cst_36 = arith.constant dense<0.000000e+00> : vector<16xf32>
    %79 = vector.multi_reduction <add>, %78, %cst_36 [1] : vector<16x16xf32> to vector<16xf32>
    %80 = vector.shape_cast %79 : vector<16xf32> to vector<16x1xf32>
    %81 = vector.broadcast %80 : vector<16x1xf32> to vector<16x16xf32>
    %82 = arith.divf %78, %81 : vector<16x16xf32>
    %cst_37 = arith.constant dense<0.000000e+00> : vector<16x16xf32>
    %83 = tpu.matmul %82, %69, %cst_37 {dimension_numbers = #tpu.dot_dimension_numbers<[1], [0], [0], [1], [0, 0, 1, 1], [], []>} : vector<16x16xf32>, vector<16x16xf32>, vector<16x16xf32> -> vector<16x16xf32>
    %84 = vector.extract_strided_slice %40 {offsets = [16, 0], sizes = [16, 32], strides = [1, 1]} : vector<32x32xf32> to vector<16x32xf32>
    %cst_38 = arith.constant dense<0.000000e+00> : vector<16x32xf32>
    %85 = tpu.matmul %83, %84, %cst_38 {dimension_numbers = #tpu.dot_dimension_numbers<[1], [0], [0], [1], [0, 0, 1, 1], [], []>} : vector<16x16xf32>, vector<16x32xf32>, vector<16x32xf32> -> vector<16x32xf32>
    %86 = arith.addf %66, %85 : vector<16x32xf32>
    %c0_39 = arith.constant 0 : index
    %c1_40 = arith.constant 1 : index
    %c0_41 = arith.constant 0 : index
    %87 = vector.load %arg6[%c0_39, %c1_40, %c0_41] : memref<2x8x96xf32, #tpu.memory_space<vmem>>, vector<1x1x32xf32>
    %88 = vector.shape_cast %87 : vector<1x1x32xf32> to vector<1x32xf32>
    %89 = vector.broadcast %88 : vector<1x32xf32> to vector<16x32xf32>
    %90 = arith.addf %86, %89 : vector<16x32xf32>
    %91 = arith.addf %90, %35 : vector<16x32xf32>
    %c0_42 = arith.constant 0 : index
    %c2_43 = arith.constant 2 : index
    %c0_44 = arith.constant 0 : index
    %92 = vector.load %arg6[%c0_42, %c2_43, %c0_44] : memref<2x8x96xf32, #tpu.memory_space<vmem>>, vector<1x1x32xf32>
    %93 = vector.shape_cast %92 : vector<1x1x32xf32> to vector<1x32xf32>
    %c0_45 = arith.constant 0 : index
    %c3 = arith.constant 3 : index
    %c0_46 = arith.constant 0 : index
    %94 = vector.load %arg6[%c0_45, %c3, %c0_46] : memref<2x8x96xf32, #tpu.memory_space<vmem>>, vector<1x1x32xf32>
    %95 = vector.shape_cast %94 : vector<1x1x32xf32> to vector<1x32xf32>
    %cst_47 = arith.constant dense<0.000000e+00> : vector<16xf32>
    %96 = vector.multi_reduction <add>, %91, %cst_47 [1] : vector<16x32xf32> to vector<16xf32>
    %97 = vector.shape_cast %96 : vector<16xf32> to vector<16x1xf32>
    %cst_48 = arith.constant 3.200000e+01 : f32
    %98 = vector.broadcast %cst_48 : f32 to vector<16x1xf32>
    %99 = arith.divf %97, %98 : vector<16x1xf32>
    %100 = vector.broadcast %99 : vector<16x1xf32> to vector<16x32xf32>
    %101 = arith.subf %91, %100 : vector<16x32xf32>
    %102 = arith.mulf %101, %101 : vector<16x32xf32>
    %cst_49 = arith.constant dense<0.000000e+00> : vector<16xf32>
    %103 = vector.multi_reduction <add>, %102, %cst_49 [1] : vector<16x32xf32> to vector<16xf32>
    %104 = vector.shape_cast %103 : vector<16xf32> to vector<16x1xf32>
    %cst_50 = arith.constant 3.200000e+01 : f32
    %105 = vector.broadcast %cst_50 : f32 to vector<16x1xf32>
    %106 = arith.divf %104, %105 : vector<16x1xf32>
    %107 = vector.broadcast %99 : vector<16x1xf32> to vector<16x32xf32>
    %108 = arith.subf %91, %107 : vector<16x32xf32>
    %cst_51 = arith.constant 9.99999996E-13 : f32
    %109 = vector.broadcast %cst_51 : f32 to vector<16x1xf32>
    %110 = arith.addf %106, %109 : vector<16x1xf32>
    %111 = math.rsqrt %110 : vector<16x1xf32>
    %112 = vector.broadcast %111 : vector<16x1xf32> to vector<16x32xf32>
    %113 = arith.mulf %108, %112 : vector<16x32xf32>
    %114 = vector.broadcast %93 : vector<1x32xf32> to vector<16x32xf32>
    %115 = arith.mulf %113, %114 : vector<16x32xf32>
    %116 = vector.broadcast %95 : vector<1x32xf32> to vector<16x32xf32>
    %117 = arith.addf %115, %116 : vector<16x32xf32>
    %cst_52 = arith.constant dense<0.000000e+00> : vector<16x64xf32>
    %118 = tpu.matmul %117, %42, %cst_52 {dimension_numbers = #tpu.dot_dimension_numbers<[1], [0], [0], [1], [0, 0, 1, 1], [], []>} : vector<16x32xf32>, vector<32x64xf32>, vector<16x64xf32> -> vector<16x64xf32>
    %c0_53 = arith.constant 0 : index
    %c4 = arith.constant 4 : index
    %c0_54 = arith.constant 0 : index
    %119 = vector.load %arg6[%c0_53, %c4, %c0_54] : memref<2x8x96xf32, #tpu.memory_space<vmem>>, vector<1x1x64xf32>
    %120 = vector.shape_cast %119 : vector<1x1x64xf32> to vector<1x64xf32>
    %121 = vector.broadcast %120 : vector<1x64xf32> to vector<16x64xf32>
    %122 = arith.addf %118, %121 : vector<16x64xf32>
    %cst_55 = arith.constant 5.000000e-01 : f32
    %123 = vector.broadcast %cst_55 : f32 to vector<16x64xf32>
    %124 = arith.mulf %123, %122 : vector<16x64xf32>
    %cst_56 = arith.constant 4.471500e-02 : f32
    %125 = vector.broadcast %cst_56 : f32 to vector<16x64xf32>
    %126 = arith.mulf %125, %122 : vector<16x64xf32>
    %127 = arith.mulf %126, %122 : vector<16x64xf32>
    %128 = arith.mulf %127, %122 : vector<16x64xf32>
    %129 = arith.addf %122, %128 : vector<16x64xf32>
    %cst_57 = arith.constant 0.797884583 : f32
    %130 = vector.broadcast %cst_57 : f32 to vector<16x64xf32>
    %131 = arith.mulf %130, %129 : vector<16x64xf32>
    %132 = math.tanh %131 : vector<16x64xf32>
    %cst_58 = arith.constant 1.000000e+00 : f32
    %133 = vector.broadcast %cst_58 : f32 to vector<16x64xf32>
    %134 = arith.addf %133, %132 : vector<16x64xf32>
    %135 = arith.mulf %124, %134 : vector<16x64xf32>
    %c0_59 = arith.constant 0 : index
    %c0_60 = arith.constant 0 : index
    %c0_61 = arith.constant 0 : index
    %136 = vector.load %arg5[%c0_59, %c0_60, %c0_61] : memref<2x64x32xf32, #tpu.memory_space<vmem>>, vector<1x64x32xf32>
    %137 = vector.shape_cast %136 : vector<1x64x32xf32> to vector<64x32xf32>
    %cst_62 = arith.constant dense<0.000000e+00> : vector<16x32xf32>
    %138 = tpu.matmul %135, %137, %cst_62 {dimension_numbers = #tpu.dot_dimension_numbers<[1], [0], [0], [1], [0, 0, 1, 1], [], []>} : vector<16x64xf32>, vector<64x32xf32>, vector<16x32xf32> -> vector<16x32xf32>
    %c0_63 = arith.constant 0 : index
    %c5 = arith.constant 5 : index
    %c0_64 = arith.constant 0 : index
    %139 = vector.load %arg6[%c0_63, %c5, %c0_64] : memref<2x8x96xf32, #tpu.memory_space<vmem>>, vector<1x1x32xf32>
    %140 = vector.shape_cast %139 : vector<1x1x32xf32> to vector<1x32xf32>
    %141 = vector.broadcast %140 : vector<1x32xf32> to vector<16x32xf32>
    %142 = arith.addf %138, %141 : vector<16x32xf32>
    %143 = arith.addf %142, %117 : vector<16x32xf32>
    %c0_65 = arith.constant 0 : index
    %c6 = arith.constant 6 : index
    %c0_66 = arith.constant 0 : index
    %144 = vector.load %arg6[%c0_65, %c6, %c0_66] : memref<2x8x96xf32, #tpu.memory_space<vmem>>, vector<1x1x32xf32>
    %145 = vector.shape_cast %144 : vector<1x1x32xf32> to vector<1x32xf32>
    %c0_67 = arith.constant 0 : index
    %c7 = arith.constant 7 : index
    %c0_68 = arith.constant 0 : index
    %146 = vector.load %arg6[%c0_67, %c7, %c0_68] : memref<2x8x96xf32, #tpu.memory_space<vmem>>, vector<1x1x32xf32>
    %147 = vector.shape_cast %146 : vector<1x1x32xf32> to vector<1x32xf32>
    %cst_69 = arith.constant dense<0.000000e+00> : vector<16xf32>
    %148 = vector.multi_reduction <add>, %143, %cst_69 [1] : vector<16x32xf32> to vector<16xf32>
    %149 = vector.shape_cast %148 : vector<16xf32> to vector<16x1xf32>
    %cst_70 = arith.constant 3.200000e+01 : f32
    %150 = vector.broadcast %cst_70 : f32 to vector<16x1xf32>
    %151 = arith.divf %149, %150 : vector<16x1xf32>
    %152 = vector.broadcast %151 : vector<16x1xf32> to vector<16x32xf32>
    %153 = arith.subf %143, %152 : vector<16x32xf32>
    %154 = arith.mulf %153, %153 : vector<16x32xf32>
    %cst_71 = arith.constant dense<0.000000e+00> : vector<16xf32>
    %155 = vector.multi_reduction <add>, %154, %cst_71 [1] : vector<16x32xf32> to vector<16xf32>
    %156 = vector.shape_cast %155 : vector<16xf32> to vector<16x1xf32>
    %cst_72 = arith.constant 3.200000e+01 : f32
    %157 = vector.broadcast %cst_72 : f32 to vector<16x1xf32>
    %158 = arith.divf %156, %157 : vector<16x1xf32>
    %159 = vector.broadcast %151 : vector<16x1xf32> to vector<16x32xf32>
    %160 = arith.subf %143, %159 : vector<16x32xf32>
    %cst_73 = arith.constant 9.99999996E-13 : f32
    %161 = vector.broadcast %cst_73 : f32 to vector<16x1xf32>
    %162 = arith.addf %158, %161 : vector<16x1xf32>
    %163 = math.rsqrt %162 : vector<16x1xf32>
    %164 = vector.broadcast %163 : vector<16x1xf32> to vector<16x32xf32>
    %165 = arith.mulf %160, %164 : vector<16x32xf32>
    %166 = vector.broadcast %145 : vector<1x32xf32> to vector<16x32xf32>
    %167 = arith.mulf %165, %166 : vector<16x32xf32>
    %168 = vector.broadcast %147 : vector<1x32xf32> to vector<16x32xf32>
    %169 = arith.addf %167, %168 : vector<16x32xf32>
    %c1_74 = arith.constant 1 : index
    %c0_75 = arith.constant 0 : index
    %c0_76 = arith.constant 0 : index
    %170 = vector.load %arg4[%c1_74, %c0_75, %c0_76] : memref<2x32x192xf32, #tpu.memory_space<vmem>>, vector<1x32x96xf32>
    %171 = vector.shape_cast %170 : vector<1x32x96xf32> to vector<32x96xf32>
    %c1_77 = arith.constant 1 : index
    %c0_78 = arith.constant 0 : index
    %c96_79 = arith.constant 96 : index
    %172 = vector.load %arg4[%c1_77, %c0_78, %c96_79] : memref<2x32x192xf32, #tpu.memory_space<vmem>>, vector<1x32x32xf32>
    %173 = vector.shape_cast %172 : vector<1x32x32xf32> to vector<32x32xf32>
    %c1_80 = arith.constant 1 : index
    %c0_81 = arith.constant 0 : index
    %c128_82 = arith.constant 128 : index
    %174 = vector.load %arg4[%c1_80, %c0_81, %c128_82] : memref<2x32x192xf32, #tpu.memory_space<vmem>>, vector<1x32x64xf32>
    %175 = vector.shape_cast %174 : vector<1x32x64xf32> to vector<32x64xf32>
    %cst_83 = arith.constant dense<0.000000e+00> : vector<16x96xf32>
    %176 = tpu.matmul %169, %171, %cst_83 {dimension_numbers = #tpu.dot_dimension_numbers<[1], [0], [0], [1], [0, 0, 1, 1], [], []>} : vector<16x32xf32>, vector<32x96xf32>, vector<16x96xf32> -> vector<16x96xf32>
    %c1_84 = arith.constant 1 : index
    %c0_85 = arith.constant 0 : index
    %c0_86 = arith.constant 0 : index
    %177 = vector.load %arg6[%c1_84, %c0_85, %c0_86] : memref<2x8x96xf32, #tpu.memory_space<vmem>>, vector<1x1x96xf32>
    %178 = vector.shape_cast %177 : vector<1x1x96xf32> to vector<1x96xf32>
    %179 = vector.broadcast %178 : vector<1x96xf32> to vector<16x96xf32>
    %180 = arith.addf %176, %179 : vector<16x96xf32>
    %181 = vector.extract_strided_slice %180 {offsets = [0, 0], sizes = [16, 16], strides = [1, 1]} : vector<16x96xf32> to vector<16x16xf32>
    %182 = vector.extract_strided_slice %180 {offsets = [0, 32], sizes = [16, 16], strides = [1, 1]} : vector<16x96xf32> to vector<16x16xf32>
    %183 = vector.extract_strided_slice %180 {offsets = [0, 64], sizes = [16, 16], strides = [1, 1]} : vector<16x96xf32> to vector<16x16xf32>
    %cst_87 = arith.constant dense<0.000000e+00> : vector<16x16xf32>
    %184 = tpu.matmul %181, %182, %cst_87 {dimension_numbers = #tpu.dot_dimension_numbers<[1], [1], [0], [0], [0, 0, 1, 0], [], []>} : vector<16x16xf32>, vector<16x16xf32>, vector<16x16xf32> -> vector<16x16xf32>
    %cst_88 = arith.constant 2.500000e-01 : f32
    %185 = vector.broadcast %cst_88 : f32 to vector<16x16xf32>
    %186 = arith.mulf %184, %185 : vector<16x16xf32>
    %187 = arith.addf %186, %36 : vector<16x16xf32>
    %cst_89 = arith.constant dense<0xFF800000> : vector<16xf32>
    %188 = vector.multi_reduction <maximumf>, %187, %cst_89 [1] : vector<16x16xf32> to vector<16xf32>
    %189 = vector.shape_cast %188 : vector<16xf32> to vector<16x1xf32>
    %190 = vector.broadcast %189 : vector<16x1xf32> to vector<16x16xf32>
    %191 = arith.subf %187, %190 : vector<16x16xf32>
    %192 = math.exp %191 : vector<16x16xf32>
    %cst_90 = arith.constant dense<0.000000e+00> : vector<16xf32>
    %193 = vector.multi_reduction <add>, %192, %cst_90 [1] : vector<16x16xf32> to vector<16xf32>
    %194 = vector.shape_cast %193 : vector<16xf32> to vector<16x1xf32>
    %195 = vector.broadcast %194 : vector<16x1xf32> to vector<16x16xf32>
    %196 = arith.divf %192, %195 : vector<16x16xf32>
    %cst_91 = arith.constant dense<0.000000e+00> : vector<16x16xf32>
    %197 = tpu.matmul %196, %183, %cst_91 {dimension_numbers = #tpu.dot_dimension_numbers<[1], [0], [0], [1], [0, 0, 1, 1], [], []>} : vector<16x16xf32>, vector<16x16xf32>, vector<16x16xf32> -> vector<16x16xf32>
    %198 = vector.extract_strided_slice %173 {offsets = [0, 0], sizes = [16, 32], strides = [1, 1]} : vector<32x32xf32> to vector<16x32xf32>
    %cst_92 = arith.constant dense<0.000000e+00> : vector<16x32xf32>
    %199 = tpu.matmul %197, %198, %cst_92 {dimension_numbers = #tpu.dot_dimension_numbers<[1], [0], [0], [1], [0, 0, 1, 1], [], []>} : vector<16x16xf32>, vector<16x32xf32>, vector<16x32xf32> -> vector<16x32xf32>
    %200 = vector.extract_strided_slice %180 {offsets = [0, 16], sizes = [16, 16], strides = [1, 1]} : vector<16x96xf32> to vector<16x16xf32>
    %201 = vector.extract_strided_slice %180 {offsets = [0, 48], sizes = [16, 16], strides = [1, 1]} : vector<16x96xf32> to vector<16x16xf32>
    %202 = vector.extract_strided_slice %180 {offsets = [0, 80], sizes = [16, 16], strides = [1, 1]} : vector<16x96xf32> to vector<16x16xf32>
    %cst_93 = arith.constant dense<0.000000e+00> : vector<16x16xf32>
    %203 = tpu.matmul %200, %201, %cst_93 {dimension_numbers = #tpu.dot_dimension_numbers<[1], [1], [0], [0], [0, 0, 1, 0], [], []>} : vector<16x16xf32>, vector<16x16xf32>, vector<16x16xf32> -> vector<16x16xf32>
    %cst_94 = arith.constant 2.500000e-01 : f32
    %204 = vector.broadcast %cst_94 : f32 to vector<16x16xf32>
    %205 = arith.mulf %203, %204 : vector<16x16xf32>
    %206 = arith.addf %205, %36 : vector<16x16xf32>
    %cst_95 = arith.constant dense<0xFF800000> : vector<16xf32>
    %207 = vector.multi_reduction <maximumf>, %206, %cst_95 [1] : vector<16x16xf32> to vector<16xf32>
    %208 = vector.shape_cast %207 : vector<16xf32> to vector<16x1xf32>
    %209 = vector.broadcast %208 : vector<16x1xf32> to vector<16x16xf32>
    %210 = arith.subf %206, %209 : vector<16x16xf32>
    %211 = math.exp %210 : vector<16x16xf32>
    %cst_96 = arith.constant dense<0.000000e+00> : vector<16xf32>
    %212 = vector.multi_reduction <add>, %211, %cst_96 [1] : vector<16x16xf32> to vector<16xf32>
    %213 = vector.shape_cast %212 : vector<16xf32> to vector<16x1xf32>
    %214 = vector.broadcast %213 : vector<16x1xf32> to vector<16x16xf32>
    %215 = arith.divf %211, %214 : vector<16x16xf32>
    %cst_97 = arith.constant dense<0.000000e+00> : vector<16x16xf32>
    %216 = tpu.matmul %215, %202, %cst_97 {dimension_numbers = #tpu.dot_dimension_numbers<[1], [0], [0], [1], [0, 0, 1, 1], [], []>} : vector<16x16xf32>, vector<16x16xf32>, vector<16x16xf32> -> vector<16x16xf32>
    %217 = vector.extract_strided_slice %173 {offsets = [16, 0], sizes = [16, 32], strides = [1, 1]} : vector<32x32xf32> to vector<16x32xf32>
    %cst_98 = arith.constant dense<0.000000e+00> : vector<16x32xf32>
    %218 = tpu.matmul %216, %217, %cst_98 {dimension_numbers = #tpu.dot_dimension_numbers<[1], [0], [0], [1], [0, 0, 1, 1], [], []>} : vector<16x16xf32>, vector<16x32xf32>, vector<16x32xf32> -> vector<16x32xf32>
    %219 = arith.addf %199, %218 : vector<16x32xf32>
    %c1_99 = arith.constant 1 : index
    %c1_100 = arith.constant 1 : index
    %c0_101 = arith.constant 0 : index
    %220 = vector.load %arg6[%c1_99, %c1_100, %c0_101] : memref<2x8x96xf32, #tpu.memory_space<vmem>>, vector<1x1x32xf32>
    %221 = vector.shape_cast %220 : vector<1x1x32xf32> to vector<1x32xf32>
    %222 = vector.broadcast %221 : vector<1x32xf32> to vector<16x32xf32>
    %223 = arith.addf %219, %222 : vector<16x32xf32>
    %224 = arith.addf %223, %169 : vector<16x32xf32>
    %c1_102 = arith.constant 1 : index
    %c2_103 = arith.constant 2 : index
    %c0_104 = arith.constant 0 : index
    %225 = vector.load %arg6[%c1_102, %c2_103, %c0_104] : memref<2x8x96xf32, #tpu.memory_space<vmem>>, vector<1x1x32xf32>
    %226 = vector.shape_cast %225 : vector<1x1x32xf32> to vector<1x32xf32>
    %c1_105 = arith.constant 1 : index
    %c3_106 = arith.constant 3 : index
    %c0_107 = arith.constant 0 : index
    %227 = vector.load %arg6[%c1_105, %c3_106, %c0_107] : memref<2x8x96xf32, #tpu.memory_space<vmem>>, vector<1x1x32xf32>
    %228 = vector.shape_cast %227 : vector<1x1x32xf32> to vector<1x32xf32>
    %cst_108 = arith.constant dense<0.000000e+00> : vector<16xf32>
    %229 = vector.multi_reduction <add>, %224, %cst_108 [1] : vector<16x32xf32> to vector<16xf32>
    %230 = vector.shape_cast %229 : vector<16xf32> to vector<16x1xf32>
    %cst_109 = arith.constant 3.200000e+01 : f32
    %231 = vector.broadcast %cst_109 : f32 to vector<16x1xf32>
    %232 = arith.divf %230, %231 : vector<16x1xf32>
    %233 = vector.broadcast %232 : vector<16x1xf32> to vector<16x32xf32>
    %234 = arith.subf %224, %233 : vector<16x32xf32>
    %235 = arith.mulf %234, %234 : vector<16x32xf32>
    %cst_110 = arith.constant dense<0.000000e+00> : vector<16xf32>
    %236 = vector.multi_reduction <add>, %235, %cst_110 [1] : vector<16x32xf32> to vector<16xf32>
    %237 = vector.shape_cast %236 : vector<16xf32> to vector<16x1xf32>
    %cst_111 = arith.constant 3.200000e+01 : f32
    %238 = vector.broadcast %cst_111 : f32 to vector<16x1xf32>
    %239 = arith.divf %237, %238 : vector<16x1xf32>
    %240 = vector.broadcast %232 : vector<16x1xf32> to vector<16x32xf32>
    %241 = arith.subf %224, %240 : vector<16x32xf32>
    %cst_112 = arith.constant 9.99999996E-13 : f32
    %242 = vector.broadcast %cst_112 : f32 to vector<16x1xf32>
    %243 = arith.addf %239, %242 : vector<16x1xf32>
    %244 = math.rsqrt %243 : vector<16x1xf32>
    %245 = vector.broadcast %244 : vector<16x1xf32> to vector<16x32xf32>
    %246 = arith.mulf %241, %245 : vector<16x32xf32>
    %247 = vector.broadcast %226 : vector<1x32xf32> to vector<16x32xf32>
    %248 = arith.mulf %246, %247 : vector<16x32xf32>
    %249 = vector.broadcast %228 : vector<1x32xf32> to vector<16x32xf32>
    %250 = arith.addf %248, %249 : vector<16x32xf32>
    %cst_113 = arith.constant dense<0.000000e+00> : vector<16x64xf32>
    %251 = tpu.matmul %250, %175, %cst_113 {dimension_numbers = #tpu.dot_dimension_numbers<[1], [0], [0], [1], [0, 0, 1, 1], [], []>} : vector<16x32xf32>, vector<32x64xf32>, vector<16x64xf32> -> vector<16x64xf32>
    %c1_114 = arith.constant 1 : index
    %c4_115 = arith.constant 4 : index
    %c0_116 = arith.constant 0 : index
    %252 = vector.load %arg6[%c1_114, %c4_115, %c0_116] : memref<2x8x96xf32, #tpu.memory_space<vmem>>, vector<1x1x64xf32>
    %253 = vector.shape_cast %252 : vector<1x1x64xf32> to vector<1x64xf32>
    %254 = vector.broadcast %253 : vector<1x64xf32> to vector<16x64xf32>
    %255 = arith.addf %251, %254 : vector<16x64xf32>
    %cst_117 = arith.constant 5.000000e-01 : f32
    %256 = vector.broadcast %cst_117 : f32 to vector<16x64xf32>
    %257 = arith.mulf %256, %255 : vector<16x64xf32>
    %cst_118 = arith.constant 4.471500e-02 : f32
    %258 = vector.broadcast %cst_118 : f32 to vector<16x64xf32>
    %259 = arith.mulf %258, %255 : vector<16x64xf32>
    %260 = arith.mulf %259, %255 : vector<16x64xf32>
    %261 = arith.mulf %260, %255 : vector<16x64xf32>
    %262 = arith.addf %255, %261 : vector<16x64xf32>
    %cst_119 = arith.constant 0.797884583 : f32
    %263 = vector.broadcast %cst_119 : f32 to vector<16x64xf32>
    %264 = arith.mulf %263, %262 : vector<16x64xf32>
    %265 = math.tanh %264 : vector<16x64xf32>
    %cst_120 = arith.constant 1.000000e+00 : f32
    %266 = vector.broadcast %cst_120 : f32 to vector<16x64xf32>
    %267 = arith.addf %266, %265 : vector<16x64xf32>
    %268 = arith.mulf %257, %267 : vector<16x64xf32>
    %c1_121 = arith.constant 1 : index
    %c0_122 = arith.constant 0 : index
    %c0_123 = arith.constant 0 : index
    %269 = vector.load %arg5[%c1_121, %c0_122, %c0_123] : memref<2x64x32xf32, #tpu.memory_space<vmem>>, vector<1x64x32xf32>
    %270 = vector.shape_cast %269 : vector<1x64x32xf32> to vector<64x32xf32>
    %cst_124 = arith.constant dense<0.000000e+00> : vector<16x32xf32>
    %271 = tpu.matmul %268, %270, %cst_124 {dimension_numbers = #tpu.dot_dimension_numbers<[1], [0], [0], [1], [0, 0, 1, 1], [], []>} : vector<16x64xf32>, vector<64x32xf32>, vector<16x32xf32> -> vector<16x32xf32>
    %c1_125 = arith.constant 1 : index
    %c5_126 = arith.constant 5 : index
    %c0_127 = arith.constant 0 : index
    %272 = vector.load %arg6[%c1_125, %c5_126, %c0_127] : memref<2x8x96xf32, #tpu.memory_space<vmem>>, vector<1x1x32xf32>
    %273 = vector.shape_cast %272 : vector<1x1x32xf32> to vector<1x32xf32>
    %274 = vector.broadcast %273 : vector<1x32xf32> to vector<16x32xf32>
    %275 = arith.addf %271, %274 : vector<16x32xf32>
    %276 = arith.addf %275, %250 : vector<16x32xf32>
    %c1_128 = arith.constant 1 : index
    %c6_129 = arith.constant 6 : index
    %c0_130 = arith.constant 0 : index
    %277 = vector.load %arg6[%c1_128, %c6_129, %c0_130] : memref<2x8x96xf32, #tpu.memory_space<vmem>>, vector<1x1x32xf32>
    %278 = vector.shape_cast %277 : vector<1x1x32xf32> to vector<1x32xf32>
    %c1_131 = arith.constant 1 : index
    %c7_132 = arith.constant 7 : index
    %c0_133 = arith.constant 0 : index
    %279 = vector.load %arg6[%c1_131, %c7_132, %c0_133] : memref<2x8x96xf32, #tpu.memory_space<vmem>>, vector<1x1x32xf32>
    %280 = vector.shape_cast %279 : vector<1x1x32xf32> to vector<1x32xf32>
    %cst_134 = arith.constant dense<0.000000e+00> : vector<16xf32>
    %281 = vector.multi_reduction <add>, %276, %cst_134 [1] : vector<16x32xf32> to vector<16xf32>
    %282 = vector.shape_cast %281 : vector<16xf32> to vector<16x1xf32>
    %cst_135 = arith.constant 3.200000e+01 : f32
    %283 = vector.broadcast %cst_135 : f32 to vector<16x1xf32>
    %284 = arith.divf %282, %283 : vector<16x1xf32>
    %285 = vector.broadcast %284 : vector<16x1xf32> to vector<16x32xf32>
    %286 = arith.subf %276, %285 : vector<16x32xf32>
    %287 = arith.mulf %286, %286 : vector<16x32xf32>
    %cst_136 = arith.constant dense<0.000000e+00> : vector<16xf32>
    %288 = vector.multi_reduction <add>, %287, %cst_136 [1] : vector<16x32xf32> to vector<16xf32>
    %289 = vector.shape_cast %288 : vector<16xf32> to vector<16x1xf32>
    %cst_137 = arith.constant 3.200000e+01 : f32
    %290 = vector.broadcast %cst_137 : f32 to vector<16x1xf32>
    %291 = arith.divf %289, %290 : vector<16x1xf32>
    %292 = vector.broadcast %284 : vector<16x1xf32> to vector<16x32xf32>
    %293 = arith.subf %276, %292 : vector<16x32xf32>
    %cst_138 = arith.constant 9.99999996E-13 : f32
    %294 = vector.broadcast %cst_138 : f32 to vector<16x1xf32>
    %295 = arith.addf %291, %294 : vector<16x1xf32>
    %296 = math.rsqrt %295 : vector<16x1xf32>
    %297 = vector.broadcast %296 : vector<16x1xf32> to vector<16x32xf32>
    %298 = arith.mulf %293, %297 : vector<16x32xf32>
    %299 = vector.broadcast %278 : vector<1x32xf32> to vector<16x32xf32>
    %300 = arith.mulf %298, %299 : vector<16x32xf32>
    %301 = vector.broadcast %280 : vector<1x32xf32> to vector<16x32xf32>
    %302 = arith.addf %300, %301 : vector<16x32xf32>
    %c0_139 = arith.constant 0 : index
    %c0_140 = arith.constant 0 : index
    %303 = vector.load %arg7[%c0_139, %c0_140] : memref<33x128xf32, #tpu.memory_space<vmem>>, vector<32x128xf32>
    %cst_141 = arith.constant dense<0.000000e+00> : vector<16x128xf32>
    %304 = tpu.matmul %302, %303, %cst_141 {dimension_numbers = #tpu.dot_dimension_numbers<[1], [0], [0], [1], [0, 0, 1, 1], [], []>} : vector<16x32xf32>, vector<32x128xf32>, vector<16x128xf32> -> vector<16x128xf32>
    %c32 = arith.constant 32 : index
    %c0_142 = arith.constant 0 : index
    %305 = vector.load %arg7[%c32, %c0_142] : memref<33x128xf32, #tpu.memory_space<vmem>>, vector<1x128xf32>
    %306 = vector.broadcast %305 : vector<1x128xf32> to vector<16x128xf32>
    %307 = arith.addf %304, %306 : vector<16x128xf32>
    %cst_143 = arith.constant dense<0xFF800000> : vector<16xf32>
    %308 = vector.multi_reduction <maximumf>, %307, %cst_143 [1] : vector<16x128xf32> to vector<16xf32>
    %309 = vector.shape_cast %308 : vector<16xf32> to vector<16x1xf32>
    %310 = vector.broadcast %309 : vector<16x1xf32> to vector<16x128xf32>
    %311 = arith.cmpf oeq, %307, %310 : vector<16x128xf32>
    %c128_i32 = arith.constant 128 : i32
    %312 = vector.broadcast %c128_i32 : i32 to vector<16x128xi32>
    %313 = arith.select %311, %3, %312 : vector<16x128xi1>, vector<16x128xi32>
    %cst_144 = arith.constant dense<2147483647> : vector<16xi32>
    %314 = vector.multi_reduction <minsi>, %313, %cst_144 [1] : vector<16x128xi32> to vector<16xi32>
    %315 = vector.shape_cast %314 : vector<16xi32> to vector<16x1xi32>
    %c0_i32 = arith.constant 0 : i32
    %316 = vector.broadcast %c0_i32 : i32 to vector<16x1xi32>
    %317 = arith.cmpi eq, %2, %316 : vector<16x1xi32>
    %c0_i32_145 = arith.constant 0 : i32
    %318 = vector.broadcast %c0_i32_145 : i32 to vector<16x1xi32>
    %319 = arith.select %317, %318, %315 : vector<16x1xi1>, vector<16x1xi32>
    %320 = vector.broadcast %309 : vector<16x1xf32> to vector<16x128xf32>
    %321 = arith.subf %307, %320 : vector<16x128xf32>
    %322 = math.exp %321 : vector<16x128xf32>
    %cst_146 = arith.constant dense<0.000000e+00> : vector<16xf32>
    %323 = vector.multi_reduction <add>, %322, %cst_146 [1] : vector<16x128xf32> to vector<16xf32>
    %324 = vector.shape_cast %323 : vector<16xf32> to vector<16x1xf32>
    %325 = math.log %324 : vector<16x1xf32>
    %326 = arith.addf %309, %325 : vector<16x1xf32>
    %327 = vector.broadcast %1 : vector<16x1xi32> to vector<16x128xi32>
    %328 = arith.cmpi eq, %3, %327 : vector<16x128xi32>
    %cst_147 = arith.constant 0.000000e+00 : f32
    %329 = vector.broadcast %cst_147 : f32 to vector<16x128xf32>
    %330 = arith.select %328, %307, %329 : vector<16x128xi1>, vector<16x128xf32>
    %cst_148 = arith.constant dense<0.000000e+00> : vector<16xf32>
    %331 = vector.multi_reduction <add>, %330, %cst_148 [1] : vector<16x128xf32> to vector<16xf32>
    %332 = vector.shape_cast %331 : vector<16xf32> to vector<16x1xf32>
    %c0_i32_149 = arith.constant 0 : i32
    %333 = vector.broadcast %c0_i32_149 : i32 to vector<16x1xi32>
    %334 = arith.cmpi ne, %1, %333 : vector<16x1xi32>
    %335 = arith.extui %334 : vector<16x1xi1> to vector<16x1xi32>
    %336 = arith.sitofp %335 : vector<16x1xi32> to vector<16x1xf32>
    %337 = arith.subf %326, %332 : vector<16x1xf32>
    %338 = arith.mulf %337, %336 : vector<16x1xf32>
    %cst_150 = arith.constant dense<0.000000e+00> : vector<1xf32>
    %339 = vector.multi_reduction <add>, %338, %cst_150 [0] : vector<16x1xf32> to vector<1xf32>
    %340 = vector.shape_cast %339 : vector<1xf32> to vector<1x1xf32>
    %cst_151 = arith.constant dense<0.000000e+00> : vector<1xf32>
    %341 = vector.multi_reduction <add>, %336, %cst_151 [0] : vector<16x1xf32> to vector<1xf32>
    %342 = vector.shape_cast %341 : vector<1xf32> to vector<1x1xf32>
    %343 = tpu.iota {dimensions = array<i32: 0>} : vector<16x128xi32>
    %c0_i32_152 = arith.constant 0 : i32
    %344 = vector.broadcast %c0_i32_152 : i32 to vector<16x128xi32>
    %345 = arith.cmpi eq, %3, %344 : vector<16x128xi32>
    %346 = arith.sitofp %319 : vector<16x1xi32> to vector<16x1xf32>
    %cst_153 = arith.constant 0.000000e+00 : f32
    %347 = vector.shape_cast %346 : vector<16x1xf32> to vector<16x1xf32>
    %348 = vector.broadcast %347 : vector<16x1xf32> to vector<16x128xf32>
    %349 = vector.broadcast %cst_153 : f32 to vector<16x128xf32>
    %350 = arith.select %345, %348, %349 : vector<16x128xi1>, vector<16x128xf32>
    %c0_i32_154 = arith.constant 0 : i32
    %351 = vector.broadcast %c0_i32_154 : i32 to vector<16x128xi32>
    %352 = arith.cmpi eq, %343, %351 : vector<16x128xi32>
    %c1_i32 = arith.constant 1 : i32
    %353 = vector.broadcast %c1_i32 : i32 to vector<16x128xi32>
    %354 = arith.cmpi eq, %3, %353 : vector<16x128xi32>
    %355 = arith.andi %352, %354 : vector<16x128xi1>
    %cst_155 = arith.constant 0.000000e+00 : f32
    %356 = vector.shape_cast %340 : vector<1x1xf32> to vector<1x1xf32>
    %357 = vector.broadcast %356 : vector<1x1xf32> to vector<16x128xf32>
    %358 = vector.broadcast %cst_155 : f32 to vector<16x128xf32>
    %359 = arith.select %355, %357, %358 : vector<16x128xi1>, vector<16x128xf32>
    %360 = arith.addf %350, %359 : vector<16x128xf32>
    %c0_i32_156 = arith.constant 0 : i32
    %361 = vector.broadcast %c0_i32_156 : i32 to vector<16x128xi32>
    %362 = arith.cmpi eq, %343, %361 : vector<16x128xi32>
    %c2_i32 = arith.constant 2 : i32
    %363 = vector.broadcast %c2_i32 : i32 to vector<16x128xi32>
    %364 = arith.cmpi eq, %3, %363 : vector<16x128xi32>
    %365 = arith.andi %362, %364 : vector<16x128xi1>
    %cst_157 = arith.constant 0.000000e+00 : f32
    %366 = vector.shape_cast %342 : vector<1x1xf32> to vector<1x1xf32>
    %367 = vector.broadcast %366 : vector<1x1xf32> to vector<16x128xf32>
    %368 = vector.broadcast %cst_157 : f32 to vector<16x128xf32>
    %369 = arith.select %365, %367, %368 : vector<16x128xi1>, vector<16x128xf32>
    %370 = arith.addf %360, %369 : vector<16x128xf32>
    %c0_158 = arith.constant 0 : index
    %c0_159 = arith.constant 0 : index
    %371 = vector.load %arg8[%c0_158, %c0_159] : memref<16x128xf32, #tpu.memory_space<vmem>>, vector<16x128xf32>
    tpu.vector_store %arg8[%c0_158, %c0_159], %370 {strides = array<i32>} : memref<16x128xf32, #tpu.memory_space<vmem>>, vector<16x128xf32>,
    return
  }
}

</mosaic_0001>

<llo_original>
// kernel: spell_check_bert_forward.1
$region0: #{spell_check_bert_forward.1}
  #allocation0 [shape = 'u32[]', space=smem, size = 0x4, offset = 0x4, fixed_abs, tag = 'smem constant byte address 0x4 - core index']
  #allocation1 [shape = 'u32[144,128]{1,0:T(1,128)}', space=vmem, size = 0x12000, scoped, tag = 'internal scratch']
  %s0 = inlined_call_operand.vmem [shape: s32[16,3], index: 0, kind: input, shape index: {}]
  %s1 = inlined_call_operand.vmem [shape: f32[16,16], index: 1, kind: input, shape index: {}]
  %s2 = inlined_call_operand.hbm [shape: f32[128,32], index: 2, kind: input, shape index: {}]
  %s3 = inlined_call_operand.vmem [shape: f32[18,32], index: 3, kind: input, shape index: {}]
  %s4 = inlined_call_operand.hbm [shape: f32[2,32,192], index: 4, kind: input, shape index: {}]
  %s5 = inlined_call_operand.vmem [shape: f32[2,64,32], index: 5, kind: input, shape index: {}]
  %s6 = inlined_call_operand.vmem [shape: f32[2,8,96], index: 6, kind: input, shape index: {}]
  %s7 = inlined_call_operand.vmem [shape: f32[33,128], index: 7, kind: input, shape index: {}]
  %s8 = inlined_call_operand.vmem [shape: f32[16,128], index: 8, kind: output, shape index: {}]
  %s9 = sld [smem:[#allocation0]]
  $region50: #{spell_check_bert_forward.1} parent=0
    _
  %s11 = ssub.s32 1, %s9
  %s12 = scalar_select 0, %s11, %s9
  $region1: #{spell_check_bert_forward.1} parent=0
    #allocation2 [shape = 'u8[65536]{0}', space=vmem, size = 0x10000, scoped, tag = 'input window, operand 2, single buffered']
    #allocation3 [shape = 's32[1]{0}', space=sflag, size = 0x4, scoped, tag = 'scoped memory for spell_check_bert_forward.1']
    #allocation4 [shape = 'u8[65536]{0}', space=vmem, size = 0x10000, scoped, tag = 'input window, operand 4, single buffered']
    #allocation5 [shape = 's32[1]{0}', space=sflag, size = 0x4, scoped, tag = 'scoped memory for spell_check_bert_forward.1']
    %13 = vsyncpa [#allocation3], 0
    %14 = vsyncpa [#allocation5], 0
    // Predicated region
    $region2: #{spell_check_bert_forward.1} parent=1 // pred_check
      _
    $region3: #{spell_check_bert_forward.1} parent=1 // pred_check_branch
      %16 = sbr.rel (0) target = $region5
    $region4: #{spell_check_bert_forward.1} parent=1 // pred_region
      _
    $region5: #{spell_check_bert_forward.1} parent=1 // pred_fallthru
      _
    // Predicated region
    $region6: #{spell_check_bert_forward.1} parent=1 // pred_check
      _
    $region7: #{spell_check_bert_forward.1} parent=1 // pred_check_branch
      %18 = sbr.rel (0) target = $region9
    $region8: #{spell_check_bert_forward.1} parent=1 // pred_region
      _
    $region9: #{spell_check_bert_forward.1} parent=1 // pred_fallthru
      _
    // Predicated region
    $region10: #{spell_check_bert_forward.1} parent=1 // pred_check
      _
    $region11: #{spell_check_bert_forward.1} parent=1 // pred_check_branch
      %20 = sbr.rel (0) target = $region13
    $region12: #{spell_check_bert_forward.1} parent=1 // pred_region
      %s22 = ssub.s32 2048, 2048
      %23 = vsyncadd [#allocation3], %s22
      %s24 = sshll.u32 [#allocation2], 4
      %s25 = int_to_ptr.vmem [resolvable:$true] %s24
      %30 = dma.hbm_to_vmem [thread:$0]  %s2, 2048, %s25, [#allocation3], 128, 128, 8
    $region13: #{spell_check_bert_forward.1} parent=1 // pred_fallthru
      _
    // Predicated region
    $region14: #{spell_check_bert_forward.1} parent=1 // pred_check
      _
    $region15: #{spell_check_bert_forward.1} parent=1 // pred_check_branch
      %32 = sbr.rel (0) target = $region17
    $region16: #{spell_check_bert_forward.1} parent=1 // pred_region
      _
    $region17: #{spell_check_bert_forward.1} parent=1 // pred_fallthru
      _
    // Predicated region
    $region18: #{spell_check_bert_forward.1} parent=1 // pred_check
      _
    $region19: #{spell_check_bert_forward.1} parent=1 // pred_check_branch
      %34 = sbr.rel (0) target = $region21
    $region20: #{spell_check_bert_forward.1} parent=1 // pred_region
      %s36 = ssub.s32 2048, 2048
      %37 = vsyncadd [#allocation5], %s36
      %s38 = sshll.u32 [#allocation4], 4
      %s39 = int_to_ptr.vmem [resolvable:$true] %s38
      %44 = dma.hbm_to_vmem [thread:$0]  %s4, 2048, %s39, [#allocation5], 256, 256, 16
    $region21: #{spell_check_bert_forward.1} parent=1 // pred_fallthru
      _
    // Predicated region
    $region22: #{spell_check_bert_forward.1} parent=1 // pred_check
      _
    $region23: #{spell_check_bert_forward.1} parent=1 // pred_check_branch
      %46 = sbr.rel (0) target = $region25
    $region24: #{spell_check_bert_forward.1} parent=1 // pred_region
      _
    $region25: #{spell_check_bert_forward.1} parent=1 // pred_fallthru
      _
    // Predicated region
    $region26: #{spell_check_bert_forward.1} parent=1 // pred_check
      _
    $region27: #{spell_check_bert_forward.1} parent=1 // pred_check_branch
      %48 = sbr.rel (0) target = $region29
    $region28: #{spell_check_bert_forward.1} parent=1 // pred_region
      _
    $region29: #{spell_check_bert_forward.1} parent=1 // pred_fallthru
      _
    // Predicated region
    $region30: #{spell_check_bert_forward.1} parent=1 // pred_check
      _
    $region31: #{spell_check_bert_forward.1} parent=1 // pred_check_branch
      %50 = sbr.rel (0) target = $region33
    $region32: #{spell_check_bert_forward.1} parent=1 // pred_region
      _
    $region33: #{spell_check_bert_forward.1} parent=1 // pred_fallthru
      _
    // Predicated region
    $region34: #{spell_check_bert_forward.1} parent=1 // pred_check
      _
    $region35: #{spell_check_bert_forward.1} parent=1 // pred_check_branch
      %52 = sbr.rel (0) target = $region37
    $region36: #{spell_check_bert_forward.1} parent=1 // pred_region
      %53 = dma.done [#allocation3], 2048
    $region37: #{spell_check_bert_forward.1} parent=1 // pred_fallthru
      _
    // Predicated region
    $region38: #{spell_check_bert_forward.1} parent=1 // pred_check
      _
    $region39: #{spell_check_bert_forward.1} parent=1 // pred_check_branch
      %55 = sbr.rel (0) target = $region41
    $region40: #{spell_check_bert_forward.1} parent=1 // pred_region
      %56 = dma.done [#allocation5], 2048
    $region41: #{spell_check_bert_forward.1} parent=1 // pred_fallthru
      _
    %v57 = vld [vmem:[%s0] sm:$0xff]
    %v58 = vld [vmem:[%s0 + $0x8] sm:$0xff]
    %v59 = vlaneseq
    %v60 = vand.u32 %v59, 127
    %61 = vset.pattern.permute.xlu0 0
    %62 = vperm.xlu0 %61, %v57
    %v63 = vpop.permute.xlu0 %62
    %64 = vset.pattern.permute.xlu0 0
    %65 = vperm.xlu0 %64, %v58
    %v66 = vpop.permute.xlu0 %65
    %vm67 = vcmp.eq.s32.totalorder %v60, %v63
    %vm68 = vcmp.eq.s32.totalorder %v60, %v66
    %v69 = vsel %vm67, 1, 0
    %v70 = vsel %vm68, 1, 0
    %v71 = vcvt.s32.f32 %v69
    %v72 = vcvt.s32.f32 %v70
    %v73 = vld [vmem:[#allocation2] sm:$0xff]
    %v74 = vld [vmem:[#allocation2 + $0x8] sm:$0xff]
    %v75 = vld [vmem:[#allocation2 + $0x10] sm:$0xff]
    %v76 = vld [vmem:[#allocation2 + $0x18] sm:$0xff]
    %v77 = vld [vmem:[#allocation2 + $0x20] sm:$0xff]
    %v78 = vld [vmem:[#allocation2 + $0x28] sm:$0xff]
    %v79 = vld [vmem:[#allocation2 + $0x30] sm:$0xff]
    %v80 = vld [vmem:[#allocation2 + $0x38] sm:$0xff]
    %v81 = vld [vmem:[#allocation2 + $0x40] sm:$0xff]
    %v82 = vld [vmem:[#allocation2 + $0x48] sm:$0xff]
    %v83 = vld [vmem:[#allocation2 + $0x50] sm:$0xff]
    %v84 = vld [vmem:[#allocation2 + $0x58] sm:$0xff]
    %v85 = vld [vmem:[#allocation2 + $0x60] sm:$0xff]
    %v86 = vld [vmem:[#allocation2 + $0x68] sm:$0xff]
    %v87 = vld [vmem:[#allocation2 + $0x70] sm:$0xff]
    %v88 = vld [vmem:[#allocation2 + $0x78] sm:$0xff]
    %v89 = vld [vmem:[%s3] sm:$0xff]
    %v90 = vld [vmem:[%s3 + $0x8] sm:$0xff]
    %91 = vmatprep.subr.mxu0 0.0
    %92 = vmatpush1.msra.mxu0 %v88
    %93 = vmatprep.subr.mxu0 0.0
    %94 = vmatpush1.msra.mxu0 %v87
    %95 = vmatprep.subr.mxu0 0.0
    %96 = vmatpush1.msra.mxu0 %v86
    %97 = vmatprep.subr.mxu0 0.0
    %98 = vmatpush1.msra.mxu0 %v85
    %99 = vmatprep.subr.mxu0 0.0
    %100 = vmatpush1.msra.mxu0 %v84
    %101 = vmatprep.subr.mxu0 0.0
    %102 = vmatpush1.msra.mxu0 %v83
    %103 = vmatprep.subr.mxu0 0.0
    %104 = vmatpush1.msra.mxu0 %v82
    %105 = vmatprep.subr.mxu0 0.0
    %106 = vmatpush1.msra.mxu0 %v81
    %107 = vmatprep.subr.mxu0 0.0
    %108 = vmatpush1.msra.mxu0 %v80
    %109 = vmatprep.subr.mxu0 0.0
    %110 = vmatpush1.msra.mxu0 %v79
    %111 = vmatprep.subr.mxu0 0.0
    %112 = vmatpush1.msra.mxu0 %v78
    %113 = vmatprep.subr.mxu0 0.0
    %114 = vmatpush1.msra.mxu0 %v77
    %115 = vmatprep.subr.mxu0 0.0
    %116 = vmatpush1.msra.mxu0 %v76
    %117 = vmatprep.subr.mxu0 0.0
    %118 = vmatpush1.msra.mxu0 %v75
    %119 = vmatprep.subr.mxu0 0.0
    %120 = vmatpush1.msra.mxu0 %v74
    %121 = vmatprep.subr.mxu0 0.0
    %122 = vmatpush1.msra.mxu0 %v73
    %123 = vmatprep.subr.mxu0 0.0
    %124 = vmatpush2.msra.mxu0 0.0
    %125 = vmatprep.subr.mxu0 0.0
    %126 = vmatpush2.msra.mxu0 0.0
    %127 = vmatprep.subr.mxu0 0.0
    %128 = vmatpush2.msra.mxu0 0.0
    %129 = vmatprep.subr.mxu0 0.0
    %130 = vmatpush2.msra.mxu0 0.0
    %131 = vmatprep.subr.mxu0 0.0
    %132 = vmatpush2.msra.mxu0 0.0
    %133 = vmatprep.subr.mxu0 0.0
    %134 = vmatpush2.msra.mxu0 0.0
    %135 = vmatprep.subr.mxu0 0.0
    %136 = vmatpush2.msra.mxu0 0.0
    %137 = vmatprep.subr.mxu0 0.0
    %138 = vmatpush2.msra.mxu0 0.0
    %139 = vmatprep.subr.mxu0 0.0
    %140 = vmatpush2.msra.mxu0 0.0
    %141 = vmatprep.subr.mxu0 0.0
    %142 = vmatpush2.msra.mxu0 0.0
    %143 = vmatprep.subr.mxu0 0.0
    %144 = vmatpush2.msra.mxu0 0.0
    %145 = vmatprep.subr.mxu0 0.0
    %146 = vmatpush2.msra.mxu0 0.0
    %147 = vmatprep.subr.mxu0 0.0
    %148 = vmatpush2.msra.mxu0 0.0
    %149 = vmatprep.subr.mxu0 0.0
    %150 = vmatpush2.msra.mxu0 0.0
    %151 = vmatprep.subr.mxu0 0.0
    %152 = vmatpush2.msra.mxu0 0.0
    %153 = vmatprep.subr.mxu0 0.0
    %154 = vmatpush2.msra.mxu0 0.0
    %155 = vmatprep.mubr.f32.mxu0 0.0
    %156 = vmatmul.mubr.f32.gmra.mxu0 %v71
    %v157 = vpop.f32.mrf.mxu0
    %v158 = vadd.f32 %v89, %v157
    %v159 = vpop.f32.mrf.mxu0
    %160 = vmatprep.mubr.f32.mxu0 0.0
    %161 = vmatmul.mubr.f32.gmra.mxu0 %v72
    %v162 = vpop.f32.mrf.mxu0
    %v163 = vadd.f32 %v90, %v162
    %v164 = vpop.f32.mrf.mxu0
    %165 = vdwg.mxu0
    %v166 = vld [vmem:[%s3 + $0x10] sm:$0x1]
    %v167 = vld [vmem:[%s3 + $0x11] sm:$0x1]
    %vm168 = vcmask 261120
    %v169 = vsel %vm168, %v158, 0.0
    %170 = vadd.xlane.f32.xlu0 %v169
    %v171 = vpop.xlane.xlu0 %170
    %v172 = vsel %vm168, %v163, 0.0
    %173 = vadd.xlane.f32.xlu0 %v172
    %v174 = vpop.xlane.xlu0 %173
    %v175 = vrcp.pop 32.0
    %v176 = vmul.f32 %v171, %v175
    %v177 = vmul.f32 %v174, %v175
    %v178 = vsub.f32 %v158, %v176
    %v179 = vsub.f32 %v163, %v177
    %v180 = vmul.f32 %v178, %v178
    %v181 = vmul.f32 %v179, %v179
    %v182 = vsel %vm168, %v180, 0.0
    %183 = vadd.xlane.f32.xlu0 %v182
    %v184 = vpop.xlane.xlu0 %183
    %v185 = vsel %vm168, %v181, 0.0
    %186 = vadd.xlane.f32.xlu0 %v185
    %v187 = vpop.xlane.xlu0 %186
    %v188 = vmul.f32 %v184, %v175
    %v189 = vmul.f32 %v187, %v175
    %v190 = vadd.f32 %v188, 1e-12
    %v191 = vadd.f32 %v189, 1e-12
    %v192 = vrsqrt.pop %v190
    %v193 = vrsqrt.pop %v191
    %v194 = vmul.f32 %v178, %v192
    %v195 = vmul.f32 %v179, %v193
    %v196 = vlaneseq
    %v197 = vshrl.u32 %v196, 7
    %v198 = vsub.s32 0, %v197
    %v199 = vrot.slane %v166, %v198
    %v200 = vmul.f32 %v194, %v199
    %v201 = vmul.f32 %v195, %v199
    %v202 = vlaneseq
    %v203 = vshrl.u32 %v202, 7
    %v204 = vsub.s32 0, %v203
    %v205 = vrot.slane %v167, %v204
    %v206 = vadd.f32 %v200, %v205
    %v207 = vadd.f32 %v201, %v205
    %v208 = vld [vmem:[%s1] sm:$0xff]
    %v209 = vld [vmem:[%s1 + $0x8] sm:$0xff]
    %v210 = vld [vmem:[#allocation4] sm:$0xff]
    %v211 = vld [vmem:[#allocation4 + $0x10] sm:$0xff]
    %v212 = vld [vmem:[#allocation4 + $0x20] sm:$0xff]
    %v213 = vld [vmem:[#allocation4 + $0x30] sm:$0xff]
    %v214 = vld [vmem:[#allocation4 + $0x8] sm:$0xff]
    %v215 = vld [vmem:[#allocation4 + $0x18] sm:$0xff]
    %v216 = vld [vmem:[#allocation4 + $0x28] sm:$0xff]
    %v217 = vld [vmem:[#allocation4 + $0x38] sm:$0xff]
    %v218 = vld [vmem:[%s6] sm:$0x1]
    %v219 = vlaneseq
    %v220 = vshrl.u32 %v219, 7
    %v221 = vsub.s32 0, %v220
    %v222 = vrot.slane %v218, %v221
    %v224 = vsel %vm168, %v206, 0
    %v227 = vsel %vm168, %v207, 0
    %229 = vmatprep.subr.mxu0 0.0
    %230 = vmatpush1.msra.mxu0 0.0
    %231 = vmatprep.subr.mxu0 0.0
    %232 = vmatpush1.msra.mxu0 0.0
    %233 = vmatprep.subr.mxu0 0.0
    %234 = vmatpush1.msra.mxu0 0.0
    %235 = vmatprep.subr.mxu0 0.0
    %236 = vmatpush1.msra.mxu0 0.0
    %237 = vmatprep.subr.mxu0 0.0
    %238 = vmatpush1.msra.mxu0 0.0
    %239 = vmatprep.subr.mxu0 0.0
    %240 = vmatpush1.msra.mxu0 0.0
    %241 = vmatprep.subr.mxu0 0.0
    %242 = vmatpush1.msra.mxu0 0.0
    %243 = vmatprep.subr.mxu0 0.0
    %244 = vmatpush1.msra.mxu0 0.0
    %245 = vmatprep.subr.mxu0 0.0
    %246 = vmatpush1.msra.mxu0 0.0
    %247 = vmatprep.subr.mxu0 0.0
    %248 = vmatpush1.msra.mxu0 0.0
    %249 = vmatprep.subr.mxu0 0.0
    %250 = vmatpush1.msra.mxu0 0.0
    %251 = vmatprep.subr.mxu0 0.0
    %252 = vmatpush1.msra.mxu0 0.0
    %253 = vmatprep.subr.mxu0 0.0
    %254 = vmatpush1.msra.mxu0 %v213
    %255 = vmatprep.subr.mxu0 0.0
    %256 = vmatpush1.msra.mxu0 %v212
    %257 = vmatprep.subr.mxu0 0.0
    %258 = vmatpush1.msra.mxu0 %v211
    %259 = vmatprep.subr.mxu0 0.0
    %260 = vmatpush1.msra.mxu0 %v210
    %261 = vmatprep.subr.mxu0 0.0
    %262 = vmatpush2.msra.mxu0 0.0
    %263 = vmatprep.subr.mxu0 0.0
    %264 = vmatpush2.msra.mxu0 0.0
    %265 = vmatprep.subr.mxu0 0.0
    %266 = vmatpush2.msra.mxu0 0.0
    %267 = vmatprep.subr.mxu0 0.0
    %268 = vmatpush2.msra.mxu0 0.0
    %269 = vmatprep.subr.mxu0 0.0
    %270 = vmatpush2.msra.mxu0 0.0
    %271 = vmatprep.subr.mxu0 0.0
    %272 = vmatpush2.msra.mxu0 0.0
    %273 = vmatprep.subr.mxu0 0.0
    %274 = vmatpush2.msra.mxu0 0.0
    %275 = vmatprep.subr.mxu0 0.0
    %276 = vmatpush2.msra.mxu0 0.0
    %277 = vmatprep.subr.mxu0 0.0
    %278 = vmatpush2.msra.mxu0 0.0
    %279 = vmatprep.subr.mxu0 0.0
    %280 = vmatpush2.msra.mxu0 0.0
    %281 = vmatprep.subr.mxu0 0.0
    %282 = vmatpush2.msra.mxu0 0.0
    %283 = vmatprep.subr.mxu0 0.0
    %284 = vmatpush2.msra.mxu0 0.0
    %285 = vmatprep.subr.mxu0 0.0
    %286 = vmatpush2.msra.mxu0 0.0
    %287 = vmatprep.subr.mxu0 0.0
    %288 = vmatpush2.msra.mxu0 0.0
    %289 = vmatprep.subr.mxu0 0.0
    %290 = vmatpush2.msra.mxu0 0.0
    %291 = vmatprep.subr.mxu0 0.0
    %292 = vmatpush2.msra.mxu0 0.0
    %293 = vmatprep.mubr.f32.mxu0 0.0
    %294 = vmatmul.mubr.f32.gmra.mxu0 %v224
    %v295 = vpop.f32.mrf.mxu0
    %v296 = vadd.f32 %v222, %v295
    %v297 = vpop.f32.mrf.mxu0
    %298 = vmatprep.mubr.f32.mxu0 0.0
    %299 = vmatmul.mubr.f32.gmra.mxu0 %v227
    %v300 = vpop.f32.mrf.mxu0
    %v301 = vadd.f32 %v222, %v300
    %v302 = vpop.f32.mrf.mxu0
    %303 = vdwg.mxu0
    %306 = vrot.lane.b32.xlu0 %v296, 96
    %v307 = vpop.permute.xlu0 %306
    %308 = vrot.lane.b32.xlu0 %v301, 96
    %v309 = vpop.permute.xlu0 %308
    %vm310 = vcmask 130048
    %v311 = vsel %vm310, %v296, 0
    %v313 = vsel %vm310, %v301, 0
    %v315 = vsel %vm310, %v307, 0
    %v317 = vsel %vm310, %v309, 0
    %319 = vmatprep.subr.mxu0 0.0
    %320 = vmatpush1.xpose.msra.mxu0 0.0
    %321 = vmatprep.subr.mxu0 0.0
    %322 = vmatpush1.xpose.msra.mxu0 0.0
    %323 = vmatprep.subr.mxu0 0.0
    %324 = vmatpush1.xpose.msra.mxu0 0.0
    %325 = vmatprep.subr.mxu0 0.0
    %326 = vmatpush1.xpose.msra.mxu0 0.0
    %327 = vmatprep.subr.mxu0 0.0
    %328 = vmatpush1.xpose.msra.mxu0 0.0
    %329 = vmatprep.subr.mxu0 0.0
    %330 = vmatpush1.xpose.msra.mxu0 0.0
    %331 = vmatprep.subr.mxu0 0.0
    %332 = vmatpush1.xpose.msra.mxu0 0.0
    %333 = vmatprep.subr.mxu0 0.0
    %334 = vmatpush1.xpose.msra.mxu0 0.0
    %335 = vmatprep.subr.mxu0 0.0
    %336 = vmatpush1.xpose.msra.mxu0 0.0
    %337 = vmatprep.subr.mxu0 0.0
    %338 = vmatpush1.xpose.msra.mxu0 0.0
    %339 = vmatprep.subr.mxu0 0.0
    %340 = vmatpush1.xpose.msra.mxu0 0.0
    %341 = vmatprep.subr.mxu0 0.0
    %342 = vmatpush1.xpose.msra.mxu0 0.0
    %343 = vmatprep.subr.mxu0 0.0
    %344 = vmatpush1.xpose.msra.mxu0 0.0
    %345 = vmatprep.subr.mxu0 0.0
    %346 = vmatpush1.xpose.msra.mxu0 0.0
    %347 = vmatprep.subr.mxu0 0.0
    %348 = vmatpush1.xpose.msra.mxu0 %v317
    %349 = vmatprep.subr.mxu0 0.0
    %350 = vmatpush1.xpose.msra.mxu0 %v315
    %351 = vmatprep.subr.mxu0 0.0
    %352 = vmatpush2.xpose.msra.mxu0 0.0
    %353 = vmatprep.subr.mxu0 0.0
    %354 = vmatpush2.xpose.msra.mxu0 0.0
    %355 = vmatprep.subr.mxu0 0.0
    %356 = vmatpush2.xpose.msra.mxu0 0.0
    %357 = vmatprep.subr.mxu0 0.0
    %358 = vmatpush2.xpose.msra.mxu0 0.0
    %359 = vmatprep.subr.mxu0 0.0
    %360 = vmatpush2.xpose.msra.mxu0 0.0
    %361 = vmatprep.subr.mxu0 0.0
    %362 = vmatpush2.xpose.msra.mxu0 0.0
    %363 = vmatprep.subr.mxu0 0.0
    %364 = vmatpush2.xpose.msra.mxu0 0.0
    %365 = vmatprep.subr.mxu0 0.0
    %366 = vmatpush2.xpose.msra.mxu0 0.0
    %367 = vmatprep.subr.mxu0 0.0
    %368 = vmatpush2.xpose.msra.mxu0 0.0
    %369 = vmatprep.subr.mxu0 0.0
    %370 = vmatpush2.xpose.msra.mxu0 0.0
    %371 = vmatprep.subr.mxu0 0.0
    %372 = vmatpush2.xpose.msra.mxu0 0.0
    %373 = vmatprep.subr.mxu0 0.0
    %374 = vmatpush2.xpose.msra.mxu0 0.0
    %375 = vmatprep.subr.mxu0 0.0
    %376 = vmatpush2.xpose.msra.mxu0 0.0
    %377 = vmatprep.subr.mxu0 0.0
    %378 = vmatpush2.xpose.msra.mxu0 0.0
    %379 = vmatprep.subr.mxu0 0.0
    %380 = vmatpush2.xpose.msra.mxu0 0.0
    %381 = vmatprep.subr.mxu0 0.0
    %382 = vmatpush2.xpose.msra.mxu0 0.0
    %383 = vmatprep.mubr.f32.mxu0 0.0
    %384 = vmatmul.mubr.f32.gmra.mxu0 %v311
    %v385 = vpop.f32.mrf.mxu0
    %v386 = vadd.f32 0.0, %v385
    %v387 = vpop.f32.mrf.mxu0
    %388 = vmatprep.mubr.f32.mxu0 0.0
    %389 = vmatmul.mubr.f32.gmra.mxu0 %v313
    %v390 = vpop.f32.mrf.mxu0
    %v391 = vadd.f32 0.0, %v390
    %v392 = vpop.f32.mrf.mxu0
    %393 = vdwg.mxu0
    %v394 = vmul.f32 %v386, 0.25
    %v395 = vmul.f32 %v391, 0.25
    %v396 = vadd.f32 %v394, %v208
    %v397 = vadd.f32 %v395, %v209
    %v398 = vsel %vm310, %v396, -inf
    %399 = vmax.xlane.f32.xlu0 %v398
    %v400 = vpop.xlane.xlu0 %399
    %v401 = vsel %vm310, %v397, -inf
    %402 = vmax.xlane.f32.xlu0 %v401
    %v403 = vpop.xlane.xlu0 %402
    %v404 = vsub.f32 %v396, %v400
    %v405 = vsub.f32 %v397, %v403
    %v406 = vmul.f32 %v404, 1.442695
    %v407 = vpow.pop %v406
    %v408 = vmul.f32 %v405, 1.442695
    %v409 = vpow.pop %v408
    %v410 = vsel %vm310, %v407, 0.0
    %411 = vadd.xlane.f32.xlu0 %v410
    %v412 = vpop.xlane.xlu0 %411
    %v413 = vsel %vm310, %v409, 0.0
    %414 = vadd.xlane.f32.xlu0 %v413
    %v415 = vpop.xlane.xlu0 %414
    %v416 = vrcp.pop %v412
    %v417 = vmul.f32 %v407, %v416
    %v418 = vrcp.pop %v415
    %v419 = vmul.f32 %v409, %v418
    %420 = vrot.lane.b32.xlu0 %v296, 64
    %v421 = vpop.permute.xlu0 %420
    %422 = vrot.lane.b32.xlu0 %v301, 64
    %v423 = vpop.permute.xlu0 %422
    %v427 = vsel %vm310, %v417, 0
    %v430 = vsel %vm310, %v419, 0
    %432 = vmatprep.subr.mxu0 0.0
    %433 = vmatpush1.msra.mxu0 0.0
    %434 = vmatprep.subr.mxu0 0.0
    %435 = vmatpush1.msra.mxu0 0.0
    %436 = vmatprep.subr.mxu0 0.0
    %437 = vmatpush1.msra.mxu0 0.0
    %438 = vmatprep.subr.mxu0 0.0
    %439 = vmatpush1.msra.mxu0 0.0
    %440 = vmatprep.subr.mxu0 0.0
    %441 = vmatpush1.msra.mxu0 0.0
    %442 = vmatprep.subr.mxu0 0.0
    %443 = vmatpush1.msra.mxu0 0.0
    %444 = vmatprep.subr.mxu0 0.0
    %445 = vmatpush1.msra.mxu0 0.0
    %446 = vmatprep.subr.mxu0 0.0
    %447 = vmatpush1.msra.mxu0 0.0
    %448 = vmatprep.subr.mxu0 0.0
    %449 = vmatpush1.msra.mxu0 0.0
    %450 = vmatprep.subr.mxu0 0.0
    %451 = vmatpush1.msra.mxu0 0.0
    %452 = vmatprep.subr.mxu0 0.0
    %453 = vmatpush1.msra.mxu0 0.0
    %454 = vmatprep.subr.mxu0 0.0
    %455 = vmatpush1.msra.mxu0 0.0
    %456 = vmatprep.subr.mxu0 0.0
    %457 = vmatpush1.msra.mxu0 0.0
    %458 = vmatprep.subr.mxu0 0.0
    %459 = vmatpush1.msra.mxu0 0.0
    %460 = vmatprep.subr.mxu0 0.0
    %461 = vmatpush1.msra.mxu0 %v423
    %462 = vmatprep.subr.mxu0 0.0
    %463 = vmatpush1.msra.mxu0 %v421
    %464 = vmatprep.subr.mxu0 0.0
    %465 = vmatpush2.msra.mxu0 0.0
    %466 = vmatprep.subr.mxu0 0.0
    %467 = vmatpush2.msra.mxu0 0.0
    %468 = vmatprep.subr.mxu0 0.0
    %469 = vmatpush2.msra.mxu0 0.0
    %470 = vmatprep.subr.mxu0 0.0
    %471 = vmatpush2.msra.mxu0 0.0
    %472 = vmatprep.subr.mxu0 0.0
    %473 = vmatpush2.msra.mxu0 0.0
    %474 = vmatprep.subr.mxu0 0.0
    %475 = vmatpush2.msra.mxu0 0.0
    %476 = vmatprep.subr.mxu0 0.0
    %477 = vmatpush2.msra.mxu0 0.0
    %478 = vmatprep.subr.mxu0 0.0
    %479 = vmatpush2.msra.mxu0 0.0
    %480 = vmatprep.subr.mxu0 0.0
    %481 = vmatpush2.msra.mxu0 0.0
    %482 = vmatprep.subr.mxu0 0.0
    %483 = vmatpush2.msra.mxu0 0.0
    %484 = vmatprep.subr.mxu0 0.0
    %485 = vmatpush2.msra.mxu0 0.0
    %486 = vmatprep.subr.mxu0 0.0
    %487 = vmatpush2.msra.mxu0 0.0
    %488 = vmatprep.subr.mxu0 0.0
    %489 = vmatpush2.msra.mxu0 0.0
    %490 = vmatprep.subr.mxu0 0.0
    %491 = vmatpush2.msra.mxu0 0.0
    %492 = vmatprep.subr.mxu0 0.0
    %493 = vmatpush2.msra.mxu0 0.0
    %494 = vmatprep.subr.mxu0 0.0
    %495 = vmatpush2.msra.mxu0 0.0
    %496 = vmatprep.mubr.f32.mxu0 0.0
    %497 = vmatmul.mubr.f32.gmra.mxu0 %v427
    %v498 = vpop.f32.mrf.mxu0
    %v499 = vadd.f32 0.0, %v498
    %v500 = vpop.f32.mrf.mxu0
    %501 = vmatprep.mubr.f32.mxu0 0.0
    %502 = vmatmul.mubr.f32.gmra.mxu0 %v430
    %v503 = vpop.f32.mrf.mxu0
    %v504 = vadd.f32 0.0, %v503
    %v505 = vpop.f32.mrf.mxu0
    %506 = vdwg.mxu0
    %507 = vrot.lane.b32.xlu0 %v296, 112
    %v508 = vpop.permute.xlu0 %507
    %509 = vrot.lane.b32.xlu0 %v301, 112
    %v510 = vpop.permute.xlu0 %509
    %511 = vrot.lane.b32.xlu0 %v296, 80
    %v512 = vpop.permute.xlu0 %511
    %513 = vrot.lane.b32.xlu0 %v301, 80
    %v514 = vpop.permute.xlu0 %513
    %v515 = vsel %vm310, %v508, 0
    %v517 = vsel %vm310, %v510, 0
    %v519 = vsel %vm310, %v512, 0
    %v521 = vsel %vm310, %v514, 0
    %523 = vmatprep.subr.mxu0 0.0
    %524 = vmatpush1.xpose.msra.mxu0 0.0
    %525 = vmatprep.subr.mxu0 0.0
    %526 = vmatpush1.xpose.msra.mxu0 0.0
    %527 = vmatprep.subr.mxu0 0.0
    %528 = vmatpush1.xpose.msra.mxu0 0.0
    %529 = vmatprep.subr.mxu0 0.0
    %530 = vmatpush1.xpose.msra.mxu0 0.0
    %531 = vmatprep.subr.mxu0 0.0
    %532 = vmatpush1.xpose.msra.mxu0 0.0
    %533 = vmatprep.subr.mxu0 0.0
    %534 = vmatpush1.xpose.msra.mxu0 0.0
    %535 = vmatprep.subr.mxu0 0.0
    %536 = vmatpush1.xpose.msra.mxu0 0.0
    %537 = vmatprep.subr.mxu0 0.0
    %538 = vmatpush1.xpose.msra.mxu0 0.0
    %539 = vmatprep.subr.mxu0 0.0
    %540 = vmatpush1.xpose.msra.mxu0 0.0
    %541 = vmatprep.subr.mxu0 0.0
    %542 = vmatpush1.xpose.msra.mxu0 0.0
    %543 = vmatprep.subr.mxu0 0.0
    %544 = vmatpush1.xpose.msra.mxu0 0.0
    %545 = vmatprep.subr.mxu0 0.0
    %546 = vmatpush1.xpose.msra.mxu0 0.0
    %547 = vmatprep.subr.mxu0 0.0
    %548 = vmatpush1.xpose.msra.mxu0 0.0
    %549 = vmatprep.subr.mxu0 0.0
    %550 = vmatpush1.xpose.msra.mxu0 0.0
    %551 = vmatprep.subr.mxu0 0.0
    %552 = vmatpush1.xpose.msra.mxu0 %v521
    %553 = vmatprep.subr.mxu0 0.0
    %554 = vmatpush1.xpose.msra.mxu0 %v519
    %555 = vmatprep.subr.mxu0 0.0
    %556 = vmatpush2.xpose.msra.mxu0 0.0
    %557 = vmatprep.subr.mxu0 0.0
    %558 = vmatpush2.xpose.msra.mxu0 0.0
    %559 = vmatprep.subr.mxu0 0.0
    %560 = vmatpush2.xpose.msra.mxu0 0.0
    %561 = vmatprep.subr.mxu0 0.0
    %562 = vmatpush2.xpose.msra.mxu0 0.0
    %563 = vmatprep.subr.mxu0 0.0
    %564 = vmatpush2.xpose.msra.mxu0 0.0
    %565 = vmatprep.subr.mxu0 0.0
    %566 = vmatpush2.xpose.msra.mxu0 0.0
    %567 = vmatprep.subr.mxu0 0.0
    %568 = vmatpush2.xpose.msra.mxu0 0.0
    %569 = vmatprep.subr.mxu0 0.0
    %570 = vmatpush2.xpose.msra.mxu0 0.0
    %571 = vmatprep.subr.mxu0 0.0
    %572 = vmatpush2.xpose.msra.mxu0 0.0
    %573 = vmatprep.subr.mxu0 0.0
    %574 = vmatpush2.xpose.msra.mxu0 0.0
    %575 = vmatprep.subr.mxu0 0.0
    %576 = vmatpush2.xpose.msra.mxu0 0.0
    %577 = vmatprep.subr.mxu0 0.0
    %578 = vmatpush2.xpose.msra.mxu0 0.0
    %579 = vmatprep.subr.mxu0 0.0
    %580 = vmatpush2.xpose.msra.mxu0 0.0
    %581 = vmatprep.subr.mxu0 0.0
    %582 = vmatpush2.xpose.msra.mxu0 0.0
    %583 = vmatprep.subr.mxu0 0.0
    %584 = vmatpush2.xpose.msra.mxu0 0.0
    %585 = vmatprep.subr.mxu0 0.0
    %586 = vmatpush2.xpose.msra.mxu0 0.0
    %587 = vmatprep.mubr.f32.mxu0 0.0
    %588 = vmatmul.mubr.f32.gmra.mxu0 %v515
    %v589 = vpop.f32.mrf.mxu0
    %v590 = vadd.f32 0.0, %v589
    %v591 = vpop.f32.mrf.mxu0
    %592 = vmatprep.mubr.f32.mxu0 0.0
    %593 = vmatmul.mubr.f32.gmra.mxu0 %v517
    %v594 = vpop.f32.mrf.mxu0
    %v595 = vadd.f32 0.0, %v594
    %v596 = vpop.f32.mrf.mxu0
    %597 = vdwg.mxu0
    %v598 = vmul.f32 %v590, 0.25
    %v599 = vmul.f32 %v595, 0.25
    %v600 = vadd.f32 %v598, %v208
    %v601 = vadd.f32 %v599, %v209
    %v602 = vsel %vm310, %v600, -inf
    %603 = vmax.xlane.f32.xlu0 %v602
    %v604 = vpop.xlane.xlu0 %603
    %v605 = vsel %vm310, %v601, -inf
    %606 = vmax.xlane.f32.xlu0 %v605
    %v607 = vpop.xlane.xlu0 %606
    %v608 = vsub.f32 %v600, %v604
    %v609 = vsub.f32 %v601, %v607
    %v610 = vmul.f32 %v608, 1.442695
    %v611 = vpow.pop %v610
    %v612 = vmul.f32 %v609, 1.442695
    %v613 = vpow.pop %v612
    %v614 = vsel %vm310, %v611, 0.0
    %615 = vadd.xlane.f32.xlu0 %v614
    %v616 = vpop.xlane.xlu0 %615
    %v617 = vsel %vm310, %v613, 0.0
    %618 = vadd.xlane.f32.xlu0 %v617
    %v619 = vpop.xlane.xlu0 %618
    %v620 = vrcp.pop %v616
    %v621 = vmul.f32 %v611, %v620
    %v622 = vrcp.pop %v619
    %v623 = vmul.f32 %v613, %v622
    %624 = vrot.lane.b32.xlu0 %v296, 48
    %v625 = vpop.permute.xlu0 %624
    %626 = vrot.lane.b32.xlu0 %v301, 48
    %v627 = vpop.permute.xlu0 %626
    %v631 = vsel %vm310, %v621, 0
    %v634 = vsel %vm310, %v623, 0
    %636 = vmatprep.subr.mxu0 0.0
    %637 = vmatpush1.msra.mxu0 0.0
    %638 = vmatprep.subr.mxu0 0.0
    %639 = vmatpush1.msra.mxu0 0.0
    %640 = vmatprep.subr.mxu0 0.0
    %641 = vmatpush1.msra.mxu0 0.0
    %642 = vmatprep.subr.mxu0 0.0
    %643 = vmatpush1.msra.mxu0 0.0
    %644 = vmatprep.subr.mxu0 0.0
    %645 = vmatpush1.msra.mxu0 0.0
    %646 = vmatprep.subr.mxu0 0.0
    %647 = vmatpush1.msra.mxu0 0.0
    %648 = vmatprep.subr.mxu0 0.0
    %649 = vmatpush1.msra.mxu0 0.0
    %650 = vmatprep.subr.mxu0 0.0
    %651 = vmatpush1.msra.mxu0 0.0
    %652 = vmatprep.subr.mxu0 0.0
    %653 = vmatpush1.msra.mxu0 0.0
    %654 = vmatprep.subr.mxu0 0.0
    %655 = vmatpush1.msra.mxu0 0.0
    %656 = vmatprep.subr.mxu0 0.0
    %657 = vmatpush1.msra.mxu0 0.0
    %658 = vmatprep.subr.mxu0 0.0
    %659 = vmatpush1.msra.mxu0 0.0
    %660 = vmatprep.subr.mxu0 0.0
    %661 = vmatpush1.msra.mxu0 0.0
    %662 = vmatprep.subr.mxu0 0.0
    %663 = vmatpush1.msra.mxu0 0.0
    %664 = vmatprep.subr.mxu0 0.0
    %665 = vmatpush1.msra.mxu0 %v627
    %666 = vmatprep.subr.mxu0 0.0
    %667 = vmatpush1.msra.mxu0 %v625
    %668 = vmatprep.subr.mxu0 0.0
    %669 = vmatpush2.msra.mxu0 0.0
    %670 = vmatprep.subr.mxu0 0.0
    %671 = vmatpush2.msra.mxu0 0.0
    %672 = vmatprep.subr.mxu0 0.0
    %673 = vmatpush2.msra.mxu0 0.0
    %674 = vmatprep.subr.mxu0 0.0
    %675 = vmatpush2.msra.mxu0 0.0
    %676 = vmatprep.subr.mxu0 0.0
    %677 = vmatpush2.msra.mxu0 0.0
    %678 = vmatprep.subr.mxu0 0.0
    %679 = vmatpush2.msra.mxu0 0.0
    %680 = vmatprep.subr.mxu0 0.0
    %681 = vmatpush2.msra.mxu0 0.0
    %682 = vmatprep.subr.mxu0 0.0
    %683 = vmatpush2.msra.mxu0 0.0
    %684 = vmatprep.subr.mxu0 0.0
    %685 = vmatpush2.msra.mxu0 0.0
    %686 = vmatprep.subr.mxu0 0.0
    %687 = vmatpush2.msra.mxu0 0.0
    %688 = vmatprep.subr.mxu0 0.0
    %689 = vmatpush2.msra.mxu0 0.0
    %690 = vmatprep.subr.mxu0 0.0
    %691 = vmatpush2.msra.mxu0 0.0
    %692 = vmatprep.subr.mxu0 0.0
    %693 = vmatpush2.msra.mxu0 0.0
    %694 = vmatprep.subr.mxu0 0.0
    %695 = vmatpush2.msra.mxu0 0.0
    %696 = vmatprep.subr.mxu0 0.0
    %697 = vmatpush2.msra.mxu0 0.0
    %698 = vmatprep.subr.mxu0 0.0
    %699 = vmatpush2.msra.mxu0 0.0
    %700 = vmatprep.mubr.f32.mxu0 0.0
    %701 = vmatmul.mubr.f32.gmra.mxu0 %v631
    %v702 = vpop.f32.mrf.mxu0
    %v703 = vadd.f32 0.0, %v702
    %v704 = vpop.f32.mrf.mxu0
    %705 = vmatprep.mubr.f32.mxu0 0.0
    %706 = vmatmul.mubr.f32.gmra.mxu0 %v634
    %v707 = vpop.f32.mrf.mxu0
    %v708 = vadd.f32 0.0, %v707
    %v709 = vpop.f32.mrf.mxu0
    %710 = vdwg.mxu0
    %713 = vrot.lane.b32.xlu0 %v212, 32
    %v714 = vpop.permute.xlu0 %713
    %715 = vrot.lane.b32.xlu0 %v213, 32
    %v716 = vpop.permute.xlu0 %715
    %v720 = vsel %vm310, %v703, 0
    %v723 = vsel %vm310, %v708, 0
    %725 = vmatprep.subr.mxu0 0.0
    %726 = vmatpush1.msra.mxu0 0.0
    %727 = vmatprep.subr.mxu0 0.0
    %728 = vmatpush1.msra.mxu0 0.0
    %729 = vmatprep.subr.mxu0 0.0
    %730 = vmatpush1.msra.mxu0 0.0
    %731 = vmatprep.subr.mxu0 0.0
    %732 = vmatpush1.msra.mxu0 0.0
    %733 = vmatprep.subr.mxu0 0.0
    %734 = vmatpush1.msra.mxu0 0.0
    %735 = vmatprep.subr.mxu0 0.0
    %736 = vmatpush1.msra.mxu0 0.0
    %737 = vmatprep.subr.mxu0 0.0
    %738 = vmatpush1.msra.mxu0 0.0
    %739 = vmatprep.subr.mxu0 0.0
    %740 = vmatpush1.msra.mxu0 0.0
    %741 = vmatprep.subr.mxu0 0.0
    %742 = vmatpush1.msra.mxu0 0.0
    %743 = vmatprep.subr.mxu0 0.0
    %744 = vmatpush1.msra.mxu0 0.0
    %745 = vmatprep.subr.mxu0 0.0
    %746 = vmatpush1.msra.mxu0 0.0
    %747 = vmatprep.subr.mxu0 0.0
    %748 = vmatpush1.msra.mxu0 0.0
    %749 = vmatprep.subr.mxu0 0.0
    %750 = vmatpush1.msra.mxu0 0.0
    %751 = vmatprep.subr.mxu0 0.0
    %752 = vmatpush1.msra.mxu0 0.0
    %753 = vmatprep.subr.mxu0 0.0
    %754 = vmatpush1.msra.mxu0 %v716
    %755 = vmatprep.subr.mxu0 0.0
    %756 = vmatpush1.msra.mxu0 %v714
    %757 = vmatprep.subr.mxu0 0.0
    %758 = vmatpush2.msra.mxu0 0.0
    %759 = vmatprep.subr.mxu0 0.0
    %760 = vmatpush2.msra.mxu0 0.0
    %761 = vmatprep.subr.mxu0 0.0
    %762 = vmatpush2.msra.mxu0 0.0
    %763 = vmatprep.subr.mxu0 0.0
    %764 = vmatpush2.msra.mxu0 0.0
    %765 = vmatprep.subr.mxu0 0.0
    %766 = vmatpush2.msra.mxu0 0.0
    %767 = vmatprep.subr.mxu0 0.0
    %768 = vmatpush2.msra.mxu0 0.0
    %769 = vmatprep.subr.mxu0 0.0
    %770 = vmatpush2.msra.mxu0 0.0
    %771 = vmatprep.subr.mxu0 0.0
    %772 = vmatpush2.msra.mxu0 0.0
    %773 = vmatprep.subr.mxu0 0.0
    %774 = vmatpush2.msra.mxu0 0.0
    %775 = vmatprep.subr.mxu0 0.0
    %776 = vmatpush2.msra.mxu0 0.0
    %777 = vmatprep.subr.mxu0 0.0
    %778 = vmatpush2.msra.mxu0 0.0
    %779 = vmatprep.subr.mxu0 0.0
    %780 = vmatpush2.msra.mxu0 0.0
    %781 = vmatprep.subr.mxu0 0.0
    %782 = vmatpush2.msra.mxu0 0.0
    %783 = vmatprep.subr.mxu0 0.0
    %784 = vmatpush2.msra.mxu0 0.0
    %785 = vmatprep.subr.mxu0 0.0
    %786 = vmatpush2.msra.mxu0 0.0
    %787 = vmatprep.subr.mxu0 0.0
    %788 = vmatpush2.msra.mxu0 0.0
    %789 = vmatprep.mubr.f32.mxu0 0.0
    %790 = vmatmul.mubr.f32.gmra.mxu0 %v720
    %v791 = vpop.f32.mrf.mxu0
    %v792 = vadd.f32 0.0, %v791
    %v793 = vpop.f32.mrf.mxu0
    %794 = vmatprep.mubr.f32.mxu0 0.0
    %795 = vmatmul.mubr.f32.gmra.mxu0 %v723
    %v796 = vpop.f32.mrf.mxu0
    %v797 = vadd.f32 0.0, %v796
    %v798 = vpop.f32.mrf.mxu0
    %799 = vdwg.mxu0
    %802 = vrot.lane.b32.xlu0 %v210, 32
    %v803 = vpop.permute.xlu0 %802
    %804 = vrot.lane.b32.xlu0 %v211, 32
    %v805 = vpop.permute.xlu0 %804
    %v809 = vsel %vm310, %v499, 0
    %v812 = vsel %vm310, %v504, 0
    %814 = vmatprep.subr.mxu0 0.0
    %815 = vmatpush1.msra.mxu0 0.0
    %816 = vmatprep.subr.mxu0 0.0
    %817 = vmatpush1.msra.mxu0 0.0
    %818 = vmatprep.subr.mxu0 0.0
    %819 = vmatpush1.msra.mxu0 0.0
    %820 = vmatprep.subr.mxu0 0.0
    %821 = vmatpush1.msra.mxu0 0.0
    %822 = vmatprep.subr.mxu0 0.0
    %823 = vmatpush1.msra.mxu0 0.0
    %824 = vmatprep.subr.mxu0 0.0
    %825 = vmatpush1.msra.mxu0 0.0
    %826 = vmatprep.subr.mxu0 0.0
    %827 = vmatpush1.msra.mxu0 0.0
    %828 = vmatprep.subr.mxu0 0.0
    %829 = vmatpush1.msra.mxu0 0.0
    %830 = vmatprep.subr.mxu0 0.0
    %831 = vmatpush1.msra.mxu0 0.0
    %832 = vmatprep.subr.mxu0 0.0
    %833 = vmatpush1.msra.mxu0 0.0
    %834 = vmatprep.subr.mxu0 0.0
    %835 = vmatpush1.msra.mxu0 0.0
    %836 = vmatprep.subr.mxu0 0.0
    %837 = vmatpush1.msra.mxu0 0.0
    %838 = vmatprep.subr.mxu0 0.0
    %839 = vmatpush1.msra.mxu0 0.0
    %840 = vmatprep.subr.mxu0 0.0
    %841 = vmatpush1.msra.mxu0 0.0
    %842 = vmatprep.subr.mxu0 0.0
    %843 = vmatpush1.msra.mxu0 %v805
    %844 = vmatprep.subr.mxu0 0.0
    %845 = vmatpush1.msra.mxu0 %v803
    %846 = vmatprep.subr.mxu0 0.0
    %847 = vmatpush2.msra.mxu0 0.0
    %848 = vmatprep.subr.mxu0 0.0
    %849 = vmatpush2.msra.mxu0 0.0
    %850 = vmatprep.subr.mxu0 0.0
    %851 = vmatpush2.msra.mxu0 0.0
    %852 = vmatprep.subr.mxu0 0.0
    %853 = vmatpush2.msra.mxu0 0.0
    %854 = vmatprep.subr.mxu0 0.0
    %855 = vmatpush2.msra.mxu0 0.0
    %856 = vmatprep.subr.mxu0 0.0
    %857 = vmatpush2.msra.mxu0 0.0
    %858 = vmatprep.subr.mxu0 0.0
    %859 = vmatpush2.msra.mxu0 0.0
    %860 = vmatprep.subr.mxu0 0.0
    %861 = vmatpush2.msra.mxu0 0.0
    %862 = vmatprep.subr.mxu0 0.0
    %863 = vmatpush2.msra.mxu0 0.0
    %864 = vmatprep.subr.mxu0 0.0
    %865 = vmatpush2.msra.mxu0 0.0
    %866 = vmatprep.subr.mxu0 0.0
    %867 = vmatpush2.msra.mxu0 0.0
    %868 = vmatprep.subr.mxu0 0.0
    %869 = vmatpush2.msra.mxu0 0.0
    %870 = vmatprep.subr.mxu0 0.0
    %871 = vmatpush2.msra.mxu0 0.0
    %872 = vmatprep.subr.mxu0 0.0
    %873 = vmatpush2.msra.mxu0 0.0
    %874 = vmatprep.subr.mxu0 0.0
    %875 = vmatpush2.msra.mxu0 0.0
    %876 = vmatprep.subr.mxu0 0.0
    %877 = vmatpush2.msra.mxu0 0.0
    %878 = vmatprep.mubr.f32.mxu0 0.0
    %879 = vmatmul.mubr.f32.gmra.mxu0 %v809
    %v880 = vpop.f32.mrf.mxu0
    %v881 = vadd.f32 %v792, %v880
    %v882 = vpop.f32.mrf.mxu0
    %883 = vmatprep.mubr.f32.mxu0 0.0
    %884 = vmatmul.mubr.f32.gmra.mxu0 %v812
    %v885 = vpop.f32.mrf.mxu0
    %v886 = vadd.f32 %v797, %v885
    %v887 = vpop.f32.mrf.mxu0
    %888 = vdwg.mxu0
    %v889 = vld [vmem:[%s6 + $0x1] sm:$0x1]
    %v890 = vlaneseq
    %v891 = vshrl.u32 %v890, 7
    %v892 = vsub.s32 0, %v891
    %v893 = vrot.slane %v889, %v892
    %v894 = vadd.f32 %v881, %v893
    %v895 = vadd.f32 %v886, %v893
    %v896 = vadd.f32 %v894, %v206
    %v897 = vadd.f32 %v895, %v207
    %v898 = vld [vmem:[%s6 + $0x2] sm:$0x1]
    %v899 = vld [vmem:[%s6 + $0x3] sm:$0x1]
    %v900 = vsel %vm168, %v896, 0.0
    %901 = vadd.xlane.f32.xlu0 %v900
    %v902 = vpop.xlane.xlu0 %901
    %v903 = vsel %vm168, %v897, 0.0
    %904 = vadd.xlane.f32.xlu0 %v903
    %v905 = vpop.xlane.xlu0 %904
    %v906 = vmul.f32 %v902, %v175
    %v907 = vmul.f32 %v905, %v175
    %v908 = vsub.f32 %v896, %v906
    %v909 = vsub.f32 %v897, %v907
    %v910 = vmul.f32 %v908, %v908
    %v911 = vmul.f32 %v909, %v909
    %v912 = vsel %vm168, %v910, 0.0
    %913 = vadd.xlane.f32.xlu0 %v912
    %v914 = vpop.xlane.xlu0 %913
    %v915 = vsel %vm168, %v911, 0.0
    %916 = vadd.xlane.f32.xlu0 %v915
    %v917 = vpop.xlane.xlu0 %916
    %v918 = vmul.f32 %v914, %v175
    %v919 = vmul.f32 %v917, %v175
    %v920 = vadd.f32 %v918, 1e-12
    %v921 = vadd.f32 %v919, 1e-12
    %v922 = vrsqrt.pop %v920
    %v923 = vrsqrt.pop %v921
    %v924 = vmul.f32 %v908, %v922
    %v925 = vmul.f32 %v909, %v923
    %v926 = vlaneseq
    %v927 = vshrl.u32 %v926, 7
    %v928 = vsub.s32 0, %v927
    %v929 = vrot.slane %v898, %v928
    %v930 = vmul.f32 %v924, %v929
    %v931 = vmul.f32 %v925, %v929
    %v932 = vlaneseq
    %v933 = vshrl.u32 %v932, 7
    %v934 = vsub.s32 0, %v933
    %v935 = vrot.slane %v899, %v934
    %v936 = vadd.f32 %v930, %v935
    %v937 = vadd.f32 %v931, %v935
    %v938 = vld [vmem:[%s6 + $0x4] sm:$0x1]
    %v939 = vlaneseq
    %v940 = vshrl.u32 %v939, 7
    %v941 = vsub.s32 0, %v940
    %v942 = vrot.slane %v938, %v941
    %v944 = vsel %vm168, %v936, 0
    %v947 = vsel %vm168, %v937, 0
    %949 = vmatprep.subr.mxu0 0.0
    %950 = vmatpush1.msra.mxu0 0.0
    %951 = vmatprep.subr.mxu0 0.0
    %952 = vmatpush1.msra.mxu0 0.0
    %953 = vmatprep.subr.mxu0 0.0
    %954 = vmatpush1.msra.mxu0 0.0
    %955 = vmatprep.subr.mxu0 0.0
    %956 = vmatpush1.msra.mxu0 0.0
    %957 = vmatprep.subr.mxu0 0.0
    %958 = vmatpush1.msra.mxu0 0.0
    %959 = vmatprep.subr.mxu0 0.0
    %960 = vmatpush1.msra.mxu0 0.0
    %961 = vmatprep.subr.mxu0 0.0
    %962 = vmatpush1.msra.mxu0 0.0
    %963 = vmatprep.subr.mxu0 0.0
    %964 = vmatpush1.msra.mxu0 0.0
    %965 = vmatprep.subr.mxu0 0.0
    %966 = vmatpush1.msra.mxu0 0.0
    %967 = vmatprep.subr.mxu0 0.0
    %968 = vmatpush1.msra.mxu0 0.0
    %969 = vmatprep.subr.mxu0 0.0
    %970 = vmatpush1.msra.mxu0 0.0
    %971 = vmatprep.subr.mxu0 0.0
    %972 = vmatpush1.msra.mxu0 0.0
    %973 = vmatprep.subr.mxu0 0.0
    %974 = vmatpush1.msra.mxu0 %v217
    %975 = vmatprep.subr.mxu0 0.0
    %976 = vmatpush1.msra.mxu0 %v216
    %977 = vmatprep.subr.mxu0 0.0
    %978 = vmatpush1.msra.mxu0 %v215
    %979 = vmatprep.subr.mxu0 0.0
    %980 = vmatpush1.msra.mxu0 %v214
    %981 = vmatprep.subr.mxu0 0.0
    %982 = vmatpush2.msra.mxu0 0.0
    %983 = vmatprep.subr.mxu0 0.0
    %984 = vmatpush2.msra.mxu0 0.0
    %985 = vmatprep.subr.mxu0 0.0
    %986 = vmatpush2.msra.mxu0 0.0
    %987 = vmatprep.subr.mxu0 0.0
    %988 = vmatpush2.msra.mxu0 0.0
    %989 = vmatprep.subr.mxu0 0.0
    %990 = vmatpush2.msra.mxu0 0.0
    %991 = vmatprep.subr.mxu0 0.0
    %992 = vmatpush2.msra.mxu0 0.0
    %993 = vmatprep.subr.mxu0 0.0
    %994 = vmatpush2.msra.mxu0 0.0
    %995 = vmatprep.subr.mxu0 0.0
    %996 = vmatpush2.msra.mxu0 0.0
    %997 = vmatprep.subr.mxu0 0.0
    %998 = vmatpush2.msra.mxu0 0.0
    %999 = vmatprep.subr.mxu0 0.0
    %1000 = vmatpush2.msra.mxu0 0.0
    %1001 = vmatprep.subr.mxu0 0.0
    %1002 = vmatpush2.msra.mxu0 0.0
    %1003 = vmatprep.subr.mxu0 0.0
    %1004 = vmatpush2.msra.mxu0 0.0
    %1005 = vmatprep.subr.mxu0 0.0
    %1006 = vmatpush2.msra.mxu0 0.0
    %1007 = vmatprep.subr.mxu0 0.0
    %1008 = vmatpush2.msra.mxu0 0.0
    %1009 = vmatprep.subr.mxu0 0.0
    %1010 = vmatpush2.msra.mxu0 0.0
    %1011 = vmatprep.subr.mxu0 0.0
    %1012 = vmatpush2.msra.mxu0 0.0
    %1013 = vmatprep.mubr.f32.mxu0 0.0
    %1014 = vmatmul.mubr.f32.gmra.mxu0 %v944
    %v1015 = vpop.f32.mrf.mxu0
    %v1016 = vadd.f32 %v942, %v1015
    %v1017 = vpop.f32.mrf.mxu0
    %1018 = vmatprep.mubr.f32.mxu0 0.0
    %1019 = vmatmul.mubr.f32.gmra.mxu0 %v947
    %v1020 = vpop.f32.mrf.mxu0
    %v1021 = vadd.f32 %v942, %v1020
    %v1022 = vpop.f32.mrf.mxu0
    %1023 = vdwg.mxu0
    %v1024 = vmul.f32 %v1016, 0.5
    %v1025 = vmul.f32 %v1021, 0.5
    %v1026 = vmul.f32 %v1016, 0.044715
    %v1027 = vmul.f32 %v1021, 0.044715
    %v1028 = vmul.f32 %v1026, %v1016
    %v1029 = vmul.f32 %v1027, %v1021
    %v1030 = vmul.f32 %v1028, %v1016
    %v1031 = vmul.f32 %v1029, %v1021
    %v1032 = vadd.f32 %v1016, %v1030
    %v1033 = vadd.f32 %v1021, %v1031
    %v1034 = vmul.f32 %v1032, 0.7978846
    %v1035 = vmul.f32 %v1033, 0.7978846
    %v1036 = vtanh.pop %v1034
    %v1037 = vtanh.pop %v1035
    %v1038 = vadd.f32 %v1036, 1.0
    %v1039 = vadd.f32 %v1037, 1.0
    %v1040 = vmul.f32 %v1024, %v1038
    %v1041 = vmul.f32 %v1025, %v1039
    %v1042 = vld [vmem:[%s5] sm:$0xff]
    %v1043 = vld [vmem:[%s5 + $0x8] sm:$0xff]
    %v1044 = vld [vmem:[%s5 + $0x10] sm:$0xff]
    %v1045 = vld [vmem:[%s5 + $0x18] sm:$0xff]
    %v1046 = vld [vmem:[%s5 + $0x20] sm:$0xff]
    %v1047 = vld [vmem:[%s5 + $0x28] sm:$0xff]
    %v1048 = vld [vmem:[%s5 + $0x30] sm:$0xff]
    %v1049 = vld [vmem:[%s5 + $0x38] sm:$0xff]
    %v1050 = vld [vmem:[%s6 + $0x5] sm:$0x1]
    %v1051 = vlaneseq
    %v1052 = vshrl.u32 %v1051, 7
    %v1053 = vsub.s32 0, %v1052
    %v1054 = vrot.slane %v1050, %v1053
    %vm1055 = vcmask 523264
    %v1057 = vsel %vm1055, %v1040, 0
    %v1060 = vsel %vm1055, %v1041, 0
    %1062 = vmatprep.subr.mxu0 0.0
    %1063 = vmatpush1.msra.mxu0 0.0
    %1064 = vmatprep.subr.mxu0 0.0
    %1065 = vmatpush1.msra.mxu0 0.0
    %1066 = vmatprep.subr.mxu0 0.0
    %1067 = vmatpush1.msra.mxu0 0.0
    %1068 = vmatprep.subr.mxu0 0.0
    %1069 = vmatpush1.msra.mxu0 0.0
    %1070 = vmatprep.subr.mxu0 0.0
    %1071 = vmatpush1.msra.mxu0 0.0
    %1072 = vmatprep.subr.mxu0 0.0
    %1073 = vmatpush1.msra.mxu0 0.0
    %1074 = vmatprep.subr.mxu0 0.0
    %1075 = vmatpush1.msra.mxu0 0.0
    %1076 = vmatprep.subr.mxu0 0.0
    %1077 = vmatpush1.msra.mxu0 0.0
    %1078 = vmatprep.subr.mxu0 0.0
    %1079 = vmatpush1.msra.mxu0 %v1049
    %1080 = vmatprep.subr.mxu0 0.0
    %1081 = vmatpush1.msra.mxu0 %v1048
    %1082 = vmatprep.subr.mxu0 0.0
    %1083 = vmatpush1.msra.mxu0 %v1047
    %1084 = vmatprep.subr.mxu0 0.0
    %1085 = vmatpush1.msra.mxu0 %v1046
    %1086 = vmatprep.subr.mxu0 0.0
    %1087 = vmatpush1.msra.mxu0 %v1045
    %1088 = vmatprep.subr.mxu0 0.0
    %1089 = vmatpush1.msra.mxu0 %v1044
    %1090 = vmatprep.subr.mxu0 0.0
    %1091 = vmatpush1.msra.mxu0 %v1043
    %1092 = vmatprep.subr.mxu0 0.0
    %1093 = vmatpush1.msra.mxu0 %v1042
    %1094 = vmatprep.subr.mxu0 0.0
    %1095 = vmatpush2.msra.mxu0 0.0
    %1096 = vmatprep.subr.mxu0 0.0
    %1097 = vmatpush2.msra.mxu0 0.0
    %1098 = vmatprep.subr.mxu0 0.0
    %1099 = vmatpush2.msra.mxu0 0.0
    %1100 = vmatprep.subr.mxu0 0.0
    %1101 = vmatpush2.msra.mxu0 0.0
    %1102 = vmatprep.subr.mxu0 0.0
    %1103 = vmatpush2.msra.mxu0 0.0
    %1104 = vmatprep.subr.mxu0 0.0
    %1105 = vmatpush2.msra.mxu0 0.0
    %1106 = vmatprep.subr.mxu0 0.0
    %1107 = vmatpush2.msra.mxu0 0.0
    %1108 = vmatprep.subr.mxu0 0.0
    %1109 = vmatpush2.msra.mxu0 0.0
    %1110 = vmatprep.subr.mxu0 0.0
    %1111 = vmatpush2.msra.mxu0 0.0
    %1112 = vmatprep.subr.mxu0 0.0
    %1113 = vmatpush2.msra.mxu0 0.0
    %1114 = vmatprep.subr.mxu0 0.0
    %1115 = vmatpush2.msra.mxu0 0.0
    %1116 = vmatprep.subr.mxu0 0.0
    %1117 = vmatpush2.msra.mxu0 0.0
    %1118 = vmatprep.subr.mxu0 0.0
    %1119 = vmatpush2.msra.mxu0 0.0
    %1120 = vmatprep.subr.mxu0 0.0
    %1121 = vmatpush2.msra.mxu0 0.0
    %1122 = vmatprep.subr.mxu0 0.0
    %1123 = vmatpush2.msra.mxu0 0.0
    %1124 = vmatprep.subr.mxu0 0.0
    %1125 = vmatpush2.msra.mxu0 0.0
    %1126 = vmatprep.mubr.f32.mxu0 0.0
    %1127 = vmatmul.mubr.f32.gmra.mxu0 %v1057
    %v1128 = vpop.f32.mrf.mxu0
    %v1129 = vadd.f32 %v1054, %v1128
    %v1130 = vpop.f32.mrf.mxu0
    %1131 = vmatprep.mubr.f32.mxu0 0.0
    %1132 = vmatmul.mubr.f32.gmra.mxu0 %v1060
    %v1133 = vpop.f32.mrf.mxu0
    %v1134 = vadd.f32 %v1054, %v1133
    %v1135 = vpop.f32.mrf.mxu0
    %1136 = vdwg.mxu0
    %v1137 = vadd.f32 %v1129, %v936
    %v1138 = vadd.f32 %v1134, %v937
    %v1139 = vld [vmem:[%s6 + $0x6] sm:$0x1]
    %v1140 = vld [vmem:[%s6 + $0x7] sm:$0x1]
    %v1141 = vsel %vm168, %v1137, 0.0
    %1142 = vadd.xlane.f32.xlu0 %v1141
    %v1143 = vpop.xlane.xlu0 %1142
    %v1144 = vsel %vm168, %v1138, 0.0
    %1145 = vadd.xlane.f32.xlu0 %v1144
    %v1146 = vpop.xlane.xlu0 %1145
    %v1147 = vmul.f32 %v1143, %v175
    %v1148 = vmul.f32 %v1146, %v175
    %v1149 = vsub.f32 %v1137, %v1147
    %v1150 = vsub.f32 %v1138, %v1148
    %v1151 = vmul.f32 %v1149, %v1149
    %v1152 = vmul.f32 %v1150, %v1150
    %v1153 = vsel %vm168, %v1151, 0.0
    %1154 = vadd.xlane.f32.xlu0 %v1153
    %v1155 = vpop.xlane.xlu0 %1154
    %v1156 = vsel %vm168, %v1152, 0.0
    %1157 = vadd.xlane.f32.xlu0 %v1156
    %v1158 = vpop.xlane.xlu0 %1157
    %v1159 = vmul.f32 %v1155, %v175
    %v1160 = vmul.f32 %v1158, %v175
    %v1161 = vadd.f32 %v1159, 1e-12
    %v1162 = vadd.f32 %v1160, 1e-12
    %v1163 = vrsqrt.pop %v1161
    %v1164 = vrsqrt.pop %v1162
    %v1165 = vmul.f32 %v1149, %v1163
    %v1166 = vmul.f32 %v1150, %v1164
    %v1167 = vlaneseq
    %v1168 = vshrl.u32 %v1167, 7
    %v1169 = vsub.s32 0, %v1168
    %v1170 = vrot.slane %v1139, %v1169
    %v1171 = vmul.f32 %v1165, %v1170
    %v1172 = vmul.f32 %v1166, %v1170
    %v1173 = vlaneseq
    %v1174 = vshrl.u32 %v1173, 7
    %v1175 = vsub.s32 0, %v1174
    %v1176 = vrot.slane %v1140, %v1175
    %v1177 = vadd.f32 %v1171, %v1176
    %v1178 = vadd.f32 %v1172, %v1176
    %s1179 = scalar_lea.vmem [#allocation4], 64
    %v1180 = vld [vmem:[%s1179] sm:$0xff]
    %v1181 = vld [vmem:[%s1179 + $0x10] sm:$0xff]
    %v1182 = vld [vmem:[%s1179 + $0x20] sm:$0xff]
    %v1183 = vld [vmem:[%s1179 + $0x30] sm:$0xff]
    %v1184 = vld [vmem:[%s1179 + $0x8] sm:$0xff]
    %v1185 = vld [vmem:[%s1179 + $0x18] sm:$0xff]
    %v1186 = vld [vmem:[%s1179 + $0x28] sm:$0xff]
    %v1187 = vld [vmem:[%s1179 + $0x38] sm:$0xff]
    %s1188 = scalar_lea.vmem %s6, 8
    %v1189 = vld [vmem:[%s1188] sm:$0x1]
    %v1190 = vlaneseq
    %v1191 = vshrl.u32 %v1190, 7
    %v1192 = vsub.s32 0, %v1191
    %v1193 = vrot.slane %v1189, %v1192
    %v1195 = vsel %vm168, %v1177, 0
    %v1198 = vsel %vm168, %v1178, 0
    %1200 = vmatprep.subr.mxu0 0.0
    %1201 = vmatpush1.msra.mxu0 0.0
    %1202 = vmatprep.subr.mxu0 0.0
    %1203 = vmatpush1.msra.mxu0 0.0
    %1204 = vmatprep.subr.mxu0 0.0
    %1205 = vmatpush1.msra.mxu0 0.0
    %1206 = vmatprep.subr.mxu0 0.0
    %1207 = vmatpush1.msra.mxu0 0.0
    %1208 = vmatprep.subr.mxu0 0.0
    %1209 = vmatpush1.msra.mxu0 0.0
    %1210 = vmatprep.subr.mxu0 0.0
    %1211 = vmatpush1.msra.mxu0 0.0
    %1212 = vmatprep.subr.mxu0 0.0
    %1213 = vmatpush1.msra.mxu0 0.0
    %1214 = vmatprep.subr.mxu0 0.0
    %1215 = vmatpush1.msra.mxu0 0.0
    %1216 = vmatprep.subr.mxu0 0.0
    %1217 = vmatpush1.msra.mxu0 0.0
    %1218 = vmatprep.subr.mxu0 0.0
    %1219 = vmatpush1.msra.mxu0 0.0
    %1220 = vmatprep.subr.mxu0 0.0
    %1221 = vmatpush1.msra.mxu0 0.0
    %1222 = vmatprep.subr.mxu0 0.0
    %1223 = vmatpush1.msra.mxu0 0.0
    %1224 = vmatprep.subr.mxu0 0.0
    %1225 = vmatpush1.msra.mxu0 %v1183
    %1226 = vmatprep.subr.mxu0 0.0
    %1227 = vmatpush1.msra.mxu0 %v1182
    %1228 = vmatprep.subr.mxu0 0.0
    %1229 = vmatpush1.msra.mxu0 %v1181
    %1230 = vmatprep.subr.mxu0 0.0
    %1231 = vmatpush1.msra.mxu0 %v1180
    %1232 = vmatprep.subr.mxu0 0.0
    %1233 = vmatpush2.msra.mxu0 0.0
    %1234 = vmatprep.subr.mxu0 0.0
    %1235 = vmatpush2.msra.mxu0 0.0
    %1236 = vmatprep.subr.mxu0 0.0
    %1237 = vmatpush2.msra.mxu0 0.0
    %1238 = vmatprep.subr.mxu0 0.0
    %1239 = vmatpush2.msra.mxu0 0.0
    %1240 = vmatprep.subr.mxu0 0.0
    %1241 = vmatpush2.msra.mxu0 0.0
    %1242 = vmatprep.subr.mxu0 0.0
    %1243 = vmatpush2.msra.mxu0 0.0
    %1244 = vmatprep.subr.mxu0 0.0
    %1245 = vmatpush2.msra.mxu0 0.0
    %1246 = vmatprep.subr.mxu0 0.0
    %1247 = vmatpush2.msra.mxu0 0.0
    %1248 = vmatprep.subr.mxu0 0.0
    %1249 = vmatpush2.msra.mxu0 0.0
    %1250 = vmatprep.subr.mxu0 0.0
    %1251 = vmatpush2.msra.mxu0 0.0
    %1252 = vmatprep.subr.mxu0 0.0
    %1253 = vmatpush2.msra.mxu0 0.0
    %1254 = vmatprep.subr.mxu0 0.0
    %1255 = vmatpush2.msra.mxu0 0.0
    %1256 = vmatprep.subr.mxu0 0.0
    %1257 = vmatpush2.msra.mxu0 0.0
    %1258 = vmatprep.subr.mxu0 0.0
    %1259 = vmatpush2.msra.mxu0 0.0
    %1260 = vmatprep.subr.mxu0 0.0
    %1261 = vmatpush2.msra.mxu0 0.0
    %1262 = vmatprep.subr.mxu0 0.0
    %1263 = vmatpush2.msra.mxu0 0.0
    %1264 = vmatprep.mubr.f32.mxu0 0.0
    %1265 = vmatmul.mubr.f32.gmra.mxu0 %v1195
    %v1266 = vpop.f32.mrf.mxu0
    %v1267 = vadd.f32 %v1193, %v1266
    %v1268 = vpop.f32.mrf.mxu0
    %1269 = vmatprep.mubr.f32.mxu0 0.0
    %1270 = vmatmul.mubr.f32.gmra.mxu0 %v1198
    %v1271 = vpop.f32.mrf.mxu0
    %v1272 = vadd.f32 %v1193, %v1271
    %v1273 = vpop.f32.mrf.mxu0
    %1274 = vdwg.mxu0
    %1277 = vrot.lane.b32.xlu0 %v1267, 96
    %v1278 = vpop.permute.xlu0 %1277
    %1279 = vrot.lane.b32.xlu0 %v1272, 96
    %v1280 = vpop.permute.xlu0 %1279
    %v1281 = vsel %vm310, %v1267, 0
    %v1283 = vsel %vm310, %v1272, 0
    %v1285 = vsel %vm310, %v1278, 0
    %v1287 = vsel %vm310, %v1280, 0
    %1289 = vmatprep.subr.mxu0 0.0
    %1290 = vmatpush1.xpose.msra.mxu0 0.0
    %1291 = vmatprep.subr.mxu0 0.0
    %1292 = vmatpush1.xpose.msra.mxu0 0.0
    %1293 = vmatprep.subr.mxu0 0.0
    %1294 = vmatpush1.xpose.msra.mxu0 0.0
    %1295 = vmatprep.subr.mxu0 0.0
    %1296 = vmatpush1.xpose.msra.mxu0 0.0
    %1297 = vmatprep.subr.mxu0 0.0
    %1298 = vmatpush1.xpose.msra.mxu0 0.0
    %1299 = vmatprep.subr.mxu0 0.0
    %1300 = vmatpush1.xpose.msra.mxu0 0.0
    %1301 = vmatprep.subr.mxu0 0.0
    %1302 = vmatpush1.xpose.msra.mxu0 0.0
    %1303 = vmatprep.subr.mxu0 0.0
    %1304 = vmatpush1.xpose.msra.mxu0 0.0
    %1305 = vmatprep.subr.mxu0 0.0
    %1306 = vmatpush1.xpose.msra.mxu0 0.0
    %1307 = vmatprep.subr.mxu0 0.0
    %1308 = vmatpush1.xpose.msra.mxu0 0.0
    %1309 = vmatprep.subr.mxu0 0.0
    %1310 = vmatpush1.xpose.msra.mxu0 0.0
    %1311 = vmatprep.subr.mxu0 0.0
    %1312 = vmatpush1.xpose.msra.mxu0 0.0
    %1313 = vmatprep.subr.mxu0 0.0
    %1314 = vmatpush1.xpose.msra.mxu0 0.0
    %1315 = vmatprep.subr.mxu0 0.0
    %1316 = vmatpush1.xpose.msra.mxu0 0.0
    %1317 = vmatprep.subr.mxu0 0.0
    %1318 = vmatpush1.xpose.msra.mxu0 %v1287
    %1319 = vmatprep.subr.mxu0 0.0
    %1320 = vmatpush1.xpose.msra.mxu0 %v1285
    %1321 = vmatprep.subr.mxu0 0.0
    %1322 = vmatpush2.xpose.msra.mxu0 0.0
    %1323 = vmatprep.subr.mxu0 0.0
    %1324 = vmatpush2.xpose.msra.mxu0 0.0
    %1325 = vmatprep.subr.mxu0 0.0
    %1326 = vmatpush2.xpose.msra.mxu0 0.0
    %1327 = vmatprep.subr.mxu0 0.0
    %1328 = vmatpush2.xpose.msra.mxu0 0.0
    %1329 = vmatprep.subr.mxu0 0.0
    %1330 = vmatpush2.xpose.msra.mxu0 0.0
    %1331 = vmatprep.subr.mxu0 0.0
    %1332 = vmatpush2.xpose.msra.mxu0 0.0
    %1333 = vmatprep.subr.mxu0 0.0
    %1334 = vmatpush2.xpose.msra.mxu0 0.0
    %1335 = vmatprep.subr.mxu0 0.0
    %1336 = vmatpush2.xpose.msra.mxu0 0.0
    %1337 = vmatprep.subr.mxu0 0.0
    %1338 = vmatpush2.xpose.msra.mxu0 0.0
    %1339 = vmatprep.subr.mxu0 0.0
    %1340 = vmatpush2.xpose.msra.mxu0 0.0
    %1341 = vmatprep.subr.mxu0 0.0
    %1342 = vmatpush2.xpose.msra.mxu0 0.0
    %1343 = vmatprep.subr.mxu0 0.0
    %1344 = vmatpush2.xpose.msra.mxu0 0.0
    %1345 = vmatprep.subr.mxu0 0.0
    %1346 = vmatpush2.xpose.msra.mxu0 0.0
    %1347 = vmatprep.subr.mxu0 0.0
    %1348 = vmatpush2.xpose.msra.mxu0 0.0
    %1349 = vmatprep.subr.mxu0 0.0
    %1350 = vmatpush2.xpose.msra.mxu0 0.0
    %1351 = vmatprep.subr.mxu0 0.0
    %1352 = vmatpush2.xpose.msra.mxu0 0.0
    %1353 = vmatprep.mubr.f32.mxu0 0.0
    %1354 = vmatmul.mubr.f32.gmra.mxu0 %v1281
    %v1355 = vpop.f32.mrf.mxu0
    %v1356 = vadd.f32 0.0, %v1355
    %v1357 = vpop.f32.mrf.mxu0
    %1358 = vmatprep.mubr.f32.mxu0 0.0
    %1359 = vmatmul.mubr.f32.gmra.mxu0 %v1283
    %v1360 = vpop.f32.mrf.mxu0
    %v1361 = vadd.f32 0.0, %v1360
    %v1362 = vpop.f32.mrf.mxu0
    %1363 = vdwg.mxu0
    %v1364 = vmul.f32 %v1356, 0.25
    %v1365 = vmul.f32 %v1361, 0.25
    %v1366 = vadd.f32 %v1364, %v208
    %v1367 = vadd.f32 %v1365, %v209
    %v1368 = vsel %vm310, %v1366, -inf
    %1369 = vmax.xlane.f32.xlu0 %v1368
    %v1370 = vpop.xlane.xlu0 %1369
    %v1371 = vsel %vm310, %v1367, -inf
    %1372 = vmax.xlane.f32.xlu0 %v1371
    %v1373 = vpop.xlane.xlu0 %1372
    %v1374 = vsub.f32 %v1366, %v1370
    %v1375 = vsub.f32 %v1367, %v1373
    %v1376 = vmul.f32 %v1374, 1.442695
    %v1377 = vpow.pop %v1376
    %v1378 = vmul.f32 %v1375, 1.442695
    %v1379 = vpow.pop %v1378
    %v1380 = vsel %vm310, %v1377, 0.0
    %1381 = vadd.xlane.f32.xlu0 %v1380
    %v1382 = vpop.xlane.xlu0 %1381
    %v1383 = vsel %vm310, %v1379, 0.0
    %1384 = vadd.xlane.f32.xlu0 %v1383
    %v1385 = vpop.xlane.xlu0 %1384
    %v1386 = vrcp.pop %v1382
    %v1387 = vmul.f32 %v1377, %v1386
    %v1388 = vrcp.pop %v1385
    %v1389 = vmul.f32 %v1379, %v1388
    %1390 = vrot.lane.b32.xlu0 %v1267, 64
    %v1391 = vpop.permute.xlu0 %1390
    %1392 = vrot.lane.b32.xlu0 %v1272, 64
    %v1393 = vpop.permute.xlu0 %1392
    %v1397 = vsel %vm310, %v1387, 0
    %v1400 = vsel %vm310, %v1389, 0
    %1402 = vmatprep.subr.mxu0 0.0
    %1403 = vmatpush1.msra.mxu0 0.0
    %1404 = vmatprep.subr.mxu0 0.0
    %1405 = vmatpush1.msra.mxu0 0.0
    %1406 = vmatprep.subr.mxu0 0.0
    %1407 = vmatpush1.msra.mxu0 0.0
    %1408 = vmatprep.subr.mxu0 0.0
    %1409 = vmatpush1.msra.mxu0 0.0
    %1410 = vmatprep.subr.mxu0 0.0
    %1411 = vmatpush1.msra.mxu0 0.0
    %1412 = vmatprep.subr.mxu0 0.0
    %1413 = vmatpush1.msra.mxu0 0.0
    %1414 = vmatprep.subr.mxu0 0.0
    %1415 = vmatpush1.msra.mxu0 0.0
    %1416 = vmatprep.subr.mxu0 0.0
    %1417 = vmatpush1.msra.mxu0 0.0
    %1418 = vmatprep.subr.mxu0 0.0
    %1419 = vmatpush1.msra.mxu0 0.0
    %1420 = vmatprep.subr.mxu0 0.0
    %1421 = vmatpush1.msra.mxu0 0.0
    %1422 = vmatprep.subr.mxu0 0.0
    %1423 = vmatpush1.msra.mxu0 0.0
    %1424 = vmatprep.subr.mxu0 0.0
    %1425 = vmatpush1.msra.mxu0 0.0
    %1426 = vmatprep.subr.mxu0 0.0
    %1427 = vmatpush1.msra.mxu0 0.0
    %1428 = vmatprep.subr.mxu0 0.0
    %1429 = vmatpush1.msra.mxu0 0.0
    %1430 = vmatprep.subr.mxu0 0.0
    %1431 = vmatpush1.msra.mxu0 %v1393
    %1432 = vmatprep.subr.mxu0 0.0
    %1433 = vmatpush1.msra.mxu0 %v1391
    %1434 = vmatprep.subr.mxu0 0.0
    %1435 = vmatpush2.msra.mxu0 0.0
    %1436 = vmatprep.subr.mxu0 0.0
    %1437 = vmatpush2.msra.mxu0 0.0
    %1438 = vmatprep.subr.mxu0 0.0
    %1439 = vmatpush2.msra.mxu0 0.0
    %1440 = vmatprep.subr.mxu0 0.0
    %1441 = vmatpush2.msra.mxu0 0.0
    %1442 = vmatprep.subr.mxu0 0.0
    %1443 = vmatpush2.msra.mxu0 0.0
    %1444 = vmatprep.subr.mxu0 0.0
    %1445 = vmatpush2.msra.mxu0 0.0
    %1446 = vmatprep.subr.mxu0 0.0
    %1447 = vmatpush2.msra.mxu0 0.0
    %1448 = vmatprep.subr.mxu0 0.0
    %1449 = vmatpush2.msra.mxu0 0.0
    %1450 = vmatprep.subr.mxu0 0.0
    %1451 = vmatpush2.msra.mxu0 0.0
    %1452 = vmatprep.subr.mxu0 0.0
    %1453 = vmatpush2.msra.mxu0 0.0
    %1454 = vmatprep.subr.mxu0 0.0
    %1455 = vmatpush2.msra.mxu0 0.0
    %1456 = vmatprep.subr.mxu0 0.0
    %1457 = vmatpush2.msra.mxu0 0.0
    %1458 = vmatprep.subr.mxu0 0.0
    %1459 = vmatpush2.msra.mxu0 0.0
    %1460 = vmatprep.subr.mxu0 0.0
    %1461 = vmatpush2.msra.mxu0 0.0
    %1462 = vmatprep.subr.mxu0 0.0
    %1463 = vmatpush2.msra.mxu0 0.0
    %1464 = vmatprep.subr.mxu0 0.0
    %1465 = vmatpush2.msra.mxu0 0.0
    %1466 = vmatprep.mubr.f32.mxu0 0.0
    %1467 = vmatmul.mubr.f32.gmra.mxu0 %v1397
    %v1468 = vpop.f32.mrf.mxu0
    %v1469 = vadd.f32 0.0, %v1468
    %v1470 = vpop.f32.mrf.mxu0
    %1471 = vmatprep.mubr.f32.mxu0 0.0
    %1472 = vmatmul.mubr.f32.gmra.mxu0 %v1400
    %v1473 = vpop.f32.mrf.mxu0
    %v1474 = vadd.f32 0.0, %v1473
    %v1475 = vpop.f32.mrf.mxu0
    %1476 = vdwg.mxu0
    %1477 = vrot.lane.b32.xlu0 %v1267, 112
    %v1478 = vpop.permute.xlu0 %1477
    %1479 = vrot.lane.b32.xlu0 %v1272, 112
    %v1480 = vpop.permute.xlu0 %1479
    %1481 = vrot.lane.b32.xlu0 %v1267, 80
    %v1482 = vpop.permute.xlu0 %1481
    %1483 = vrot.lane.b32.xlu0 %v1272, 80
    %v1484 = vpop.permute.xlu0 %1483
    %v1485 = vsel %vm310, %v1478, 0
    %v1487 = vsel %vm310, %v1480, 0
    %v1489 = vsel %vm310, %v1482, 0
    %v1491 = vsel %vm310, %v1484, 0
    %1493 = vmatprep.subr.mxu0 0.0
    %1494 = vmatpush1.xpose.msra.mxu0 0.0
    %1495 = vmatprep.subr.mxu0 0.0
    %1496 = vmatpush1.xpose.msra.mxu0 0.0
    %1497 = vmatprep.subr.mxu0 0.0
    %1498 = vmatpush1.xpose.msra.mxu0 0.0
    %1499 = vmatprep.subr.mxu0 0.0
    %1500 = vmatpush1.xpose.msra.mxu0 0.0
    %1501 = vmatprep.subr.mxu0 0.0
    %1502 = vmatpush1.xpose.msra.mxu0 0.0
    %1503 = vmatprep.subr.mxu0 0.0
    %1504 = vmatpush1.xpose.msra.mxu0 0.0
    %1505 = vmatprep.subr.mxu0 0.0
    %1506 = vmatpush1.xpose.msra.mxu0 0.0
    %1507 = vmatprep.subr.mxu0 0.0
    %1508 = vmatpush1.xpose.msra.mxu0 0.0
    %1509 = vmatprep.subr.mxu0 0.0
    %1510 = vmatpush1.xpose.msra.mxu0 0.0
    %1511 = vmatprep.subr.mxu0 0.0
    %1512 = vmatpush1.xpose.msra.mxu0 0.0
    %1513 = vmatprep.subr.mxu0 0.0
    %1514 = vmatpush1.xpose.msra.mxu0 0.0
    %1515 = vmatprep.subr.mxu0 0.0
    %1516 = vmatpush1.xpose.msra.mxu0 0.0
    %1517 = vmatprep.subr.mxu0 0.0
    %1518 = vmatpush1.xpose.msra.mxu0 0.0
    %1519 = vmatprep.subr.mxu0 0.0
    %1520 = vmatpush1.xpose.msra.mxu0 0.0
    %1521 = vmatprep.subr.mxu0 0.0
    %1522 = vmatpush1.xpose.msra.mxu0 %v1491
    %1523 = vmatprep.subr.mxu0 0.0
    %1524 = vmatpush1.xpose.msra.mxu0 %v1489
    %1525 = vmatprep.subr.mxu0 0.0
    %1526 = vmatpush2.xpose.msra.mxu0 0.0
    %1527 = vmatprep.subr.mxu0 0.0
    %1528 = vmatpush2.xpose.msra.mxu0 0.0
    %1529 = vmatprep.subr.mxu0 0.0
    %1530 = vmatpush2.xpose.msra.mxu0 0.0
    %1531 = vmatprep.subr.mxu0 0.0
    %1532 = vmatpush2.xpose.msra.mxu0 0.0
    %1533 = vmatprep.subr.mxu0 0.0
    %1534 = vmatpush2.xpose.msra.mxu0 0.0
    %1535 = vmatprep.subr.mxu0 0.0
    %1536 = vmatpush2.xpose.msra.mxu0 0.0
    %1537 = vmatprep.subr.mxu0 0.0
    %1538 = vmatpush2.xpose.msra.mxu0 0.0
    %1539 = vmatprep.subr.mxu0 0.0
    %1540 = vmatpush2.xpose.msra.mxu0 0.0
    %1541 = vmatprep.subr.mxu0 0.0
    %1542 = vmatpush2.xpose.msra.mxu0 0.0
    %1543 = vmatprep.subr.mxu0 0.0
    %1544 = vmatpush2.xpose.msra.mxu0 0.0
    %1545 = vmatprep.subr.mxu0 0.0
    %1546 = vmatpush2.xpose.msra.mxu0 0.0
    %1547 = vmatprep.subr.mxu0 0.0
    %1548 = vmatpush2.xpose.msra.mxu0 0.0
    %1549 = vmatprep.subr.mxu0 0.0
    %1550 = vmatpush2.xpose.msra.mxu0 0.0
    %1551 = vmatprep.subr.mxu0 0.0
    %1552 = vmatpush2.xpose.msra.mxu0 0.0
    %1553 = vmatprep.subr.mxu0 0.0
    %1554 = vmatpush2.xpose.msra.mxu0 0.0
    %1555 = vmatprep.subr.mxu0 0.0
    %1556 = vmatpush2.xpose.msra.mxu0 0.0
    %1557 = vmatprep.mubr.f32.mxu0 0.0
    %1558 = vmatmul.mubr.f32.gmra.mxu0 %v1485
    %v1559 = vpop.f32.mrf.mxu0
    %v1560 = vadd.f32 0.0, %v1559
    %v1561 = vpop.f32.mrf.mxu0
    %1562 = vmatprep.mubr.f32.mxu0 0.0
    %1563 = vmatmul.mubr.f32.gmra.mxu0 %v1487
    %v1564 = vpop.f32.mrf.mxu0
    %v1565 = vadd.f32 0.0, %v1564
    %v1566 = vpop.f32.mrf.mxu0
    %1567 = vdwg.mxu0
    %v1568 = vmul.f32 %v1560, 0.25
    %v1569 = vmul.f32 %v1565, 0.25
    %v1570 = vadd.f32 %v1568, %v208
    %v1571 = vadd.f32 %v1569, %v209
    %v1572 = vsel %vm310, %v1570, -inf
    %1573 = vmax.xlane.f32.xlu0 %v1572
    %v1574 = vpop.xlane.xlu0 %1573
    %v1575 = vsel %vm310, %v1571, -inf
    %1576 = vmax.xlane.f32.xlu0 %v1575
    %v1577 = vpop.xlane.xlu0 %1576
    %v1578 = vsub.f32 %v1570, %v1574
    %v1579 = vsub.f32 %v1571, %v1577
    %v1580 = vmul.f32 %v1578, 1.442695
    %v1581 = vpow.pop %v1580
    %v1582 = vmul.f32 %v1579, 1.442695
    %v1583 = vpow.pop %v1582
    %v1584 = vsel %vm310, %v1581, 0.0
    %1585 = vadd.xlane.f32.xlu0 %v1584
    %v1586 = vpop.xlane.xlu0 %1585
    %v1587 = vsel %vm310, %v1583, 0.0
    %1588 = vadd.xlane.f32.xlu0 %v1587
    %v1589 = vpop.xlane.xlu0 %1588
    %v1590 = vrcp.pop %v1586
    %v1591 = vmul.f32 %v1581, %v1590
    %v1592 = vrcp.pop %v1589
    %v1593 = vmul.f32 %v1583, %v1592
    %1594 = vrot.lane.b32.xlu0 %v1267, 48
    %v1595 = vpop.permute.xlu0 %1594
    %1596 = vrot.lane.b32.xlu0 %v1272, 48
    %v1597 = vpop.permute.xlu0 %1596
    %v1601 = vsel %vm310, %v1591, 0
    %v1604 = vsel %vm310, %v1593, 0
    %1606 = vmatprep.subr.mxu0 0.0
    %1607 = vmatpush1.msra.mxu0 0.0
    %1608 = vmatprep.subr.mxu0 0.0
    %1609 = vmatpush1.msra.mxu0 0.0
    %1610 = vmatprep.subr.mxu0 0.0
    %1611 = vmatpush1.msra.mxu0 0.0
    %1612 = vmatprep.subr.mxu0 0.0
    %1613 = vmatpush1.msra.mxu0 0.0
    %1614 = vmatprep.subr.mxu0 0.0
    %1615 = vmatpush1.msra.mxu0 0.0
    %1616 = vmatprep.subr.mxu0 0.0
    %1617 = vmatpush1.msra.mxu0 0.0
    %1618 = vmatprep.subr.mxu0 0.0
    %1619 = vmatpush1.msra.mxu0 0.0
    %1620 = vmatprep.subr.mxu0 0.0
    %1621 = vmatpush1.msra.mxu0 0.0
    %1622 = vmatprep.subr.mxu0 0.0
    %1623 = vmatpush1.msra.mxu0 0.0
    %1624 = vmatprep.subr.mxu0 0.0
    %1625 = vmatpush1.msra.mxu0 0.0
    %1626 = vmatprep.subr.mxu0 0.0
    %1627 = vmatpush1.msra.mxu0 0.0
    %1628 = vmatprep.subr.mxu0 0.0
    %1629 = vmatpush1.msra.mxu0 0.0
    %1630 = vmatprep.subr.mxu0 0.0
    %1631 = vmatpush1.msra.mxu0 0.0
    %1632 = vmatprep.subr.mxu0 0.0
    %1633 = vmatpush1.msra.mxu0 0.0
    %1634 = vmatprep.subr.mxu0 0.0
    %1635 = vmatpush1.msra.mxu0 %v1597
    %1636 = vmatprep.subr.mxu0 0.0
    %1637 = vmatpush1.msra.mxu0 %v1595
    %1638 = vmatprep.subr.mxu0 0.0
    %1639 = vmatpush2.msra.mxu0 0.0
    %1640 = vmatprep.subr.mxu0 0.0
    %1641 = vmatpush2.msra.mxu0 0.0
    %1642 = vmatprep.subr.mxu0 0.0
    %1643 = vmatpush2.msra.mxu0 0.0
    %1644 = vmatprep.subr.mxu0 0.0
    %1645 = vmatpush2.msra.mxu0 0.0
    %1646 = vmatprep.subr.mxu0 0.0
    %1647 = vmatpush2.msra.mxu0 0.0
    %1648 = vmatprep.subr.mxu0 0.0
    %1649 = vmatpush2.msra.mxu0 0.0
    %1650 = vmatprep.subr.mxu0 0.0
    %1651 = vmatpush2.msra.mxu0 0.0
    %1652 = vmatprep.subr.mxu0 0.0
    %1653 = vmatpush2.msra.mxu0 0.0
    %1654 = vmatprep.subr.mxu0 0.0
    %1655 = vmatpush2.msra.mxu0 0.0
    %1656 = vmatprep.subr.mxu0 0.0
    %1657 = vmatpush2.msra.mxu0 0.0
    %1658 = vmatprep.subr.mxu0 0.0
    %1659 = vmatpush2.msra.mxu0 0.0
    %1660 = vmatprep.subr.mxu0 0.0
    %1661 = vmatpush2.msra.mxu0 0.0
    %1662 = vmatprep.subr.mxu0 0.0
    %1663 = vmatpush2.msra.mxu0 0.0
    %1664 = vmatprep.subr.mxu0 0.0
    %1665 = vmatpush2.msra.mxu0 0.0
    %1666 = vmatprep.subr.mxu0 0.0
    %1667 = vmatpush2.msra.mxu0 0.0
    %1668 = vmatprep.subr.mxu0 0.0
    %1669 = vmatpush2.msra.mxu0 0.0
    %1670 = vmatprep.mubr.f32.mxu0 0.0
    %1671 = vmatmul.mubr.f32.gmra.mxu0 %v1601
    %v1672 = vpop.f32.mrf.mxu0
    %v1673 = vadd.f32 0.0, %v1672
    %v1674 = vpop.f32.mrf.mxu0
    %1675 = vmatprep.mubr.f32.mxu0 0.0
    %1676 = vmatmul.mubr.f32.gmra.mxu0 %v1604
    %v1677 = vpop.f32.mrf.mxu0
    %v1678 = vadd.f32 0.0, %v1677
    %v1679 = vpop.f32.mrf.mxu0
    %1680 = vdwg.mxu0
    %1683 = vrot.lane.b32.xlu0 %v1182, 32
    %v1684 = vpop.permute.xlu0 %1683
    %1685 = vrot.lane.b32.xlu0 %v1183, 32
    %v1686 = vpop.permute.xlu0 %1685
    %v1690 = vsel %vm310, %v1673, 0
    %v1693 = vsel %vm310, %v1678, 0
    %1695 = vmatprep.subr.mxu0 0.0
    %1696 = vmatpush1.msra.mxu0 0.0
    %1697 = vmatprep.subr.mxu0 0.0
    %1698 = vmatpush1.msra.mxu0 0.0
    %1699 = vmatprep.subr.mxu0 0.0
    %1700 = vmatpush1.msra.mxu0 0.0
    %1701 = vmatprep.subr.mxu0 0.0
    %1702 = vmatpush1.msra.mxu0 0.0
    %1703 = vmatprep.subr.mxu0 0.0
    %1704 = vmatpush1.msra.mxu0 0.0
    %1705 = vmatprep.subr.mxu0 0.0
    %1706 = vmatpush1.msra.mxu0 0.0
    %1707 = vmatprep.subr.mxu0 0.0
    %1708 = vmatpush1.msra.mxu0 0.0
    %1709 = vmatprep.subr.mxu0 0.0
    %1710 = vmatpush1.msra.mxu0 0.0
    %1711 = vmatprep.subr.mxu0 0.0
    %1712 = vmatpush1.msra.mxu0 0.0
    %1713 = vmatprep.subr.mxu0 0.0
    %1714 = vmatpush1.msra.mxu0 0.0
    %1715 = vmatprep.subr.mxu0 0.0
    %1716 = vmatpush1.msra.mxu0 0.0
    %1717 = vmatprep.subr.mxu0 0.0
    %1718 = vmatpush1.msra.mxu0 0.0
    %1719 = vmatprep.subr.mxu0 0.0
    %1720 = vmatpush1.msra.mxu0 0.0
    %1721 = vmatprep.subr.mxu0 0.0
    %1722 = vmatpush1.msra.mxu0 0.0
    %1723 = vmatprep.subr.mxu0 0.0
    %1724 = vmatpush1.msra.mxu0 %v1686
    %1725 = vmatprep.subr.mxu0 0.0
    %1726 = vmatpush1.msra.mxu0 %v1684
    %1727 = vmatprep.subr.mxu0 0.0
    %1728 = vmatpush2.msra.mxu0 0.0
    %1729 = vmatprep.subr.mxu0 0.0
    %1730 = vmatpush2.msra.mxu0 0.0
    %1731 = vmatprep.subr.mxu0 0.0
    %1732 = vmatpush2.msra.mxu0 0.0
    %1733 = vmatprep.subr.mxu0 0.0
    %1734 = vmatpush2.msra.mxu0 0.0
    %1735 = vmatprep.subr.mxu0 0.0
    %1736 = vmatpush2.msra.mxu0 0.0
    %1737 = vmatprep.subr.mxu0 0.0
    %1738 = vmatpush2.msra.mxu0 0.0
    %1739 = vmatprep.subr.mxu0 0.0
    %1740 = vmatpush2.msra.mxu0 0.0
    %1741 = vmatprep.subr.mxu0 0.0
    %1742 = vmatpush2.msra.mxu0 0.0
    %1743 = vmatprep.subr.mxu0 0.0
    %1744 = vmatpush2.msra.mxu0 0.0
    %1745 = vmatprep.subr.mxu0 0.0
    %1746 = vmatpush2.msra.mxu0 0.0
    %1747 = vmatprep.subr.mxu0 0.0
    %1748 = vmatpush2.msra.mxu0 0.0
    %1749 = vmatprep.subr.mxu0 0.0
    %1750 = vmatpush2.msra.mxu0 0.0
    %1751 = vmatprep.subr.mxu0 0.0
    %1752 = vmatpush2.msra.mxu0 0.0
    %1753 = vmatprep.subr.mxu0 0.0
    %1754 = vmatpush2.msra.mxu0 0.0
    %1755 = vmatprep.subr.mxu0 0.0
    %1756 = vmatpush2.msra.mxu0 0.0
    %1757 = vmatprep.subr.mxu0 0.0
    %1758 = vmatpush2.msra.mxu0 0.0
    %1759 = vmatprep.mubr.f32.mxu0 0.0
    %1760 = vmatmul.mubr.f32.gmra.mxu0 %v1690
    %v1761 = vpop.f32.mrf.mxu0
    %v1762 = vadd.f32 0.0, %v1761
    %v1763 = vpop.f32.mrf.mxu0
    %1764 = vmatprep.mubr.f32.mxu0 0.0
    %1765 = vmatmul.mubr.f32.gmra.mxu0 %v1693
    %v1766 = vpop.f32.mrf.mxu0
    %v1767 = vadd.f32 0.0, %v1766
    %v1768 = vpop.f32.mrf.mxu0
    %1769 = vdwg.mxu0
    %1772 = vrot.lane.b32.xlu0 %v1180, 32
    %v1773 = vpop.permute.xlu0 %1772
    %1774 = vrot.lane.b32.xlu0 %v1181, 32
    %v1775 = vpop.permute.xlu0 %1774
    %v1779 = vsel %vm310, %v1469, 0
    %v1782 = vsel %vm310, %v1474, 0
    %1784 = vmatprep.subr.mxu0 0.0
    %1785 = vmatpush1.msra.mxu0 0.0
    %1786 = vmatprep.subr.mxu0 0.0
    %1787 = vmatpush1.msra.mxu0 0.0
    %1788 = vmatprep.subr.mxu0 0.0
    %1789 = vmatpush1.msra.mxu0 0.0
    %1790 = vmatprep.subr.mxu0 0.0
    %1791 = vmatpush1.msra.mxu0 0.0
    %1792 = vmatprep.subr.mxu0 0.0
    %1793 = vmatpush1.msra.mxu0 0.0
    %1794 = vmatprep.subr.mxu0 0.0
    %1795 = vmatpush1.msra.mxu0 0.0
    %1796 = vmatprep.subr.mxu0 0.0
    %1797 = vmatpush1.msra.mxu0 0.0
    %1798 = vmatprep.subr.mxu0 0.0
    %1799 = vmatpush1.msra.mxu0 0.0
    %1800 = vmatprep.subr.mxu0 0.0
    %1801 = vmatpush1.msra.mxu0 0.0
    %1802 = vmatprep.subr.mxu0 0.0
    %1803 = vmatpush1.msra.mxu0 0.0
    %1804 = vmatprep.subr.mxu0 0.0
    %1805 = vmatpush1.msra.mxu0 0.0
    %1806 = vmatprep.subr.mxu0 0.0
    %1807 = vmatpush1.msra.mxu0 0.0
    %1808 = vmatprep.subr.mxu0 0.0
    %1809 = vmatpush1.msra.mxu0 0.0
    %1810 = vmatprep.subr.mxu0 0.0
    %1811 = vmatpush1.msra.mxu0 0.0
    %1812 = vmatprep.subr.mxu0 0.0
    %1813 = vmatpush1.msra.mxu0 %v1775
    %1814 = vmatprep.subr.mxu0 0.0
    %1815 = vmatpush1.msra.mxu0 %v1773
    %1816 = vmatprep.subr.mxu0 0.0
    %1817 = vmatpush2.msra.mxu0 0.0
    %1818 = vmatprep.subr.mxu0 0.0
    %1819 = vmatpush2.msra.mxu0 0.0
    %1820 = vmatprep.subr.mxu0 0.0
    %1821 = vmatpush2.msra.mxu0 0.0
    %1822 = vmatprep.subr.mxu0 0.0
    %1823 = vmatpush2.msra.mxu0 0.0
    %1824 = vmatprep.subr.mxu0 0.0
    %1825 = vmatpush2.msra.mxu0 0.0
    %1826 = vmatprep.subr.mxu0 0.0
    %1827 = vmatpush2.msra.mxu0 0.0
    %1828 = vmatprep.subr.mxu0 0.0
    %1829 = vmatpush2.msra.mxu0 0.0
    %1830 = vmatprep.subr.mxu0 0.0
    %1831 = vmatpush2.msra.mxu0 0.0
    %1832 = vmatprep.subr.mxu0 0.0
    %1833 = vmatpush2.msra.mxu0 0.0
    %1834 = vmatprep.subr.mxu0 0.0
    %1835 = vmatpush2.msra.mxu0 0.0
    %1836 = vmatprep.subr.mxu0 0.0
    %1837 = vmatpush2.msra.mxu0 0.0
    %1838 = vmatprep.subr.mxu0 0.0
    %1839 = vmatpush2.msra.mxu0 0.0
    %1840 = vmatprep.subr.mxu0 0.0
    %1841 = vmatpush2.msra.mxu0 0.0
    %1842 = vmatprep.subr.mxu0 0.0
    %1843 = vmatpush2.msra.mxu0 0.0
    %1844 = vmatprep.subr.mxu0 0.0
    %1845 = vmatpush2.msra.mxu0 0.0
    %1846 = vmatprep.subr.mxu0 0.0
    %1847 = vmatpush2.msra.mxu0 0.0
    %1848 = vmatprep.mubr.f32.mxu0 0.0
    %1849 = vmatmul.mubr.f32.gmra.mxu0 %v1779
    %v1850 = vpop.f32.mrf.mxu0
    %v1851 = vadd.f32 %v1762, %v1850
    %v1852 = vpop.f32.mrf.mxu0
    %1853 = vmatprep.mubr.f32.mxu0 0.0
    %1854 = vmatmul.mubr.f32.gmra.mxu0 %v1782
    %v1855 = vpop.f32.mrf.mxu0
    %v1856 = vadd.f32 %v1767, %v1855
    %v1857 = vpop.f32.mrf.mxu0
    %1858 = vdwg.mxu0
    %v1859 = vld [vmem:[%s1188 + $0x1] sm:$0x1]
    %v1860 = vlaneseq
    %v1861 = vshrl.u32 %v1860, 7
    %v1862 = vsub.s32 0, %v1861
    %v1863 = vrot.slane %v1859, %v1862
    %v1864 = vadd.f32 %v1851, %v1863
    %v1865 = vadd.f32 %v1856, %v1863
    %v1866 = vadd.f32 %v1864, %v1177
    %v1867 = vadd.f32 %v1865, %v1178
    %v1868 = vld [vmem:[%s1188 + $0x2] sm:$0x1]
    %v1869 = vld [vmem:[%s1188 + $0x3] sm:$0x1]
    %v1870 = vsel %vm168, %v1866, 0.0
    %1871 = vadd.xlane.f32.xlu0 %v1870
    %v1872 = vpop.xlane.xlu0 %1871
    %v1873 = vsel %vm168, %v1867, 0.0
    %1874 = vadd.xlane.f32.xlu0 %v1873
    %v1875 = vpop.xlane.xlu0 %1874
    %v1876 = vmul.f32 %v1872, %v175
    %v1877 = vmul.f32 %v1875, %v175
    %v1878 = vsub.f32 %v1866, %v1876
    %v1879 = vsub.f32 %v1867, %v1877
    %v1880 = vmul.f32 %v1878, %v1878
    %v1881 = vmul.f32 %v1879, %v1879
    %v1882 = vsel %vm168, %v1880, 0.0
    %1883 = vadd.xlane.f32.xlu0 %v1882
    %v1884 = vpop.xlane.xlu0 %1883
    %v1885 = vsel %vm168, %v1881, 0.0
    %1886 = vadd.xlane.f32.xlu0 %v1885
    %v1887 = vpop.xlane.xlu0 %1886
    %v1888 = vmul.f32 %v1884, %v175
    %v1889 = vmul.f32 %v1887, %v175
    %v1890 = vadd.f32 %v1888, 1e-12
    %v1891 = vadd.f32 %v1889, 1e-12
    %v1892 = vrsqrt.pop %v1890
    %v1893 = vrsqrt.pop %v1891
    %v1894 = vmul.f32 %v1878, %v1892
    %v1895 = vmul.f32 %v1879, %v1893
    %v1896 = vlaneseq
    %v1897 = vshrl.u32 %v1896, 7
    %v1898 = vsub.s32 0, %v1897
    %v1899 = vrot.slane %v1868, %v1898
    %v1900 = vmul.f32 %v1894, %v1899
    %v1901 = vmul.f32 %v1895, %v1899
    %v1902 = vlaneseq
    %v1903 = vshrl.u32 %v1902, 7
    %v1904 = vsub.s32 0, %v1903
    %v1905 = vrot.slane %v1869, %v1904
    %v1906 = vadd.f32 %v1900, %v1905
    %v1907 = vadd.f32 %v1901, %v1905
    %v1908 = vld [vmem:[%s1188 + $0x4] sm:$0x1]
    %v1909 = vlaneseq
    %v1910 = vshrl.u32 %v1909, 7
    %v1911 = vsub.s32 0, %v1910
    %v1912 = vrot.slane %v1908, %v1911
    %v1914 = vsel %vm168, %v1906, 0
    %v1917 = vsel %vm168, %v1907, 0
    %1919 = vmatprep.subr.mxu0 0.0
    %1920 = vmatpush1.msra.mxu0 0.0
    %1921 = vmatprep.subr.mxu0 0.0
    %1922 = vmatpush1.msra.mxu0 0.0
    %1923 = vmatprep.subr.mxu0 0.0
    %1924 = vmatpush1.msra.mxu0 0.0
    %1925 = vmatprep.subr.mxu0 0.0
    %1926 = vmatpush1.msra.mxu0 0.0
    %1927 = vmatprep.subr.mxu0 0.0
    %1928 = vmatpush1.msra.mxu0 0.0
    %1929 = vmatprep.subr.mxu0 0.0
    %1930 = vmatpush1.msra.mxu0 0.0
    %1931 = vmatprep.subr.mxu0 0.0
    %1932 = vmatpush1.msra.mxu0 0.0
    %1933 = vmatprep.subr.mxu0 0.0
    %1934 = vmatpush1.msra.mxu0 0.0
    %1935 = vmatprep.subr.mxu0 0.0
    %1936 = vmatpush1.msra.mxu0 0.0
    %1937 = vmatprep.subr.mxu0 0.0
    %1938 = vmatpush1.msra.mxu0 0.0
    %1939 = vmatprep.subr.mxu0 0.0
    %1940 = vmatpush1.msra.mxu0 0.0
    %1941 = vmatprep.subr.mxu0 0.0
    %1942 = vmatpush1.msra.mxu0 0.0
    %1943 = vmatprep.subr.mxu0 0.0
    %1944 = vmatpush1.msra.mxu0 %v1187
    %1945 = vmatprep.subr.mxu0 0.0
    %1946 = vmatpush1.msra.mxu0 %v1186
    %1947 = vmatprep.subr.mxu0 0.0
    %1948 = vmatpush1.msra.mxu0 %v1185
    %1949 = vmatprep.subr.mxu0 0.0
    %1950 = vmatpush1.msra.mxu0 %v1184
    %1951 = vmatprep.subr.mxu0 0.0
    %1952 = vmatpush2.msra.mxu0 0.0
    %1953 = vmatprep.subr.mxu0 0.0
    %1954 = vmatpush2.msra.mxu0 0.0
    %1955 = vmatprep.subr.mxu0 0.0
    %1956 = vmatpush2.msra.mxu0 0.0
    %1957 = vmatprep.subr.mxu0 0.0
    %1958 = vmatpush2.msra.mxu0 0.0
    %1959 = vmatprep.subr.mxu0 0.0
    %1960 = vmatpush2.msra.mxu0 0.0
    %1961 = vmatprep.subr.mxu0 0.0
    %1962 = vmatpush2.msra.mxu0 0.0
    %1963 = vmatprep.subr.mxu0 0.0
    %1964 = vmatpush2.msra.mxu0 0.0
    %1965 = vmatprep.subr.mxu0 0.0
    %1966 = vmatpush2.msra.mxu0 0.0
    %1967 = vmatprep.subr.mxu0 0.0
    %1968 = vmatpush2.msra.mxu0 0.0
    %1969 = vmatprep.subr.mxu0 0.0
    %1970 = vmatpush2.msra.mxu0 0.0
    %1971 = vmatprep.subr.mxu0 0.0
    %1972 = vmatpush2.msra.mxu0 0.0
    %1973 = vmatprep.subr.mxu0 0.0
    %1974 = vmatpush2.msra.mxu0 0.0
    %1975 = vmatprep.subr.mxu0 0.0
    %1976 = vmatpush2.msra.mxu0 0.0
    %1977 = vmatprep.subr.mxu0 0.0
    %1978 = vmatpush2.msra.mxu0 0.0
    %1979 = vmatprep.subr.mxu0 0.0
    %1980 = vmatpush2.msra.mxu0 0.0
    %1981 = vmatprep.subr.mxu0 0.0
    %1982 = vmatpush2.msra.mxu0 0.0
    %1983 = vmatprep.mubr.f32.mxu0 0.0
    %1984 = vmatmul.mubr.f32.gmra.mxu0 %v1914
    %v1985 = vpop.f32.mrf.mxu0
    %v1986 = vadd.f32 %v1912, %v1985
    %v1987 = vpop.f32.mrf.mxu0
    %1988 = vmatprep.mubr.f32.mxu0 0.0
    %1989 = vmatmul.mubr.f32.gmra.mxu0 %v1917
    %v1990 = vpop.f32.mrf.mxu0
    %v1991 = vadd.f32 %v1912, %v1990
    %v1992 = vpop.f32.mrf.mxu0
    %1993 = vdwg.mxu0
    %v1994 = vmul.f32 %v1986, 0.5
    %v1995 = vmul.f32 %v1991, 0.5
    %v1996 = vmul.f32 %v1986, 0.044715
    %v1997 = vmul.f32 %v1991, 0.044715
    %v1998 = vmul.f32 %v1996, %v1986
    %v1999 = vmul.f32 %v1997, %v1991
    %v2000 = vmul.f32 %v1998, %v1986
    %v2001 = vmul.f32 %v1999, %v1991
    %v2002 = vadd.f32 %v1986, %v2000
    %v2003 = vadd.f32 %v1991, %v2001
    %v2004 = vmul.f32 %v2002, 0.7978846
    %v2005 = vmul.f32 %v2003, 0.7978846
    %v2006 = vtanh.pop %v2004
    %v2007 = vtanh.pop %v2005
    %v2008 = vadd.f32 %v2006, 1.0
    %v2009 = vadd.f32 %v2007, 1.0
    %v2010 = vmul.f32 %v1994, %v2008
    %v2011 = vmul.f32 %v1995, %v2009
    %s2012 = scalar_lea.vmem %s5, 64
    %v2013 = vld [vmem:[%s2012] sm:$0xff]
    %v2014 = vld [vmem:[%s2012 + $0x8] sm:$0xff]
    %v2015 = vld [vmem:[%s2012 + $0x10] sm:$0xff]
    %v2016 = vld [vmem:[%s2012 + $0x18] sm:$0xff]
    %v2017 = vld [vmem:[%s2012 + $0x20] sm:$0xff]
    %v2018 = vld [vmem:[%s2012 + $0x28] sm:$0xff]
    %v2019 = vld [vmem:[%s2012 + $0x30] sm:$0xff]
    %v2020 = vld [vmem:[%s2012 + $0x38] sm:$0xff]
    %v2021 = vld [vmem:[%s1188 + $0x5] sm:$0x1]
    %v2022 = vlaneseq
    %v2023 = vshrl.u32 %v2022, 7
    %v2024 = vsub.s32 0, %v2023
    %v2025 = vrot.slane %v2021, %v2024
    %v2027 = vsel %vm1055, %v2010, 0
    %v2030 = vsel %vm1055, %v2011, 0
    %2032 = vmatprep.subr.mxu0 0.0
    %2033 = vmatpush1.msra.mxu0 0.0
    %2034 = vmatprep.subr.mxu0 0.0
    %2035 = vmatpush1.msra.mxu0 0.0
    %2036 = vmatprep.subr.mxu0 0.0
    %2037 = vmatpush1.msra.mxu0 0.0
    %2038 = vmatprep.subr.mxu0 0.0
    %2039 = vmatpush1.msra.mxu0 0.0
    %2040 = vmatprep.subr.mxu0 0.0
    %2041 = vmatpush1.msra.mxu0 0.0
    %2042 = vmatprep.subr.mxu0 0.0
    %2043 = vmatpush1.msra.mxu0 0.0
    %2044 = vmatprep.subr.mxu0 0.0
    %2045 = vmatpush1.msra.mxu0 0.0
    %2046 = vmatprep.subr.mxu0 0.0
    %2047 = vmatpush1.msra.mxu0 0.0
    %2048 = vmatprep.subr.mxu0 0.0
    %2049 = vmatpush1.msra.mxu0 %v2020
    %2050 = vmatprep.subr.mxu0 0.0
    %2051 = vmatpush1.msra.mxu0 %v2019
    %2052 = vmatprep.subr.mxu0 0.0
    %2053 = vmatpush1.msra.mxu0 %v2018
    %2054 = vmatprep.subr.mxu0 0.0
    %2055 = vmatpush1.msra.mxu0 %v2017
    %2056 = vmatprep.subr.mxu0 0.0
    %2057 = vmatpush1.msra.mxu0 %v2016
    %2058 = vmatprep.subr.mxu0 0.0
    %2059 = vmatpush1.msra.mxu0 %v2015
    %2060 = vmatprep.subr.mxu0 0.0
    %2061 = vmatpush1.msra.mxu0 %v2014
    %2062 = vmatprep.subr.mxu0 0.0
    %2063 = vmatpush1.msra.mxu0 %v2013
    %2064 = vmatprep.subr.mxu0 0.0
    %2065 = vmatpush2.msra.mxu0 0.0
    %2066 = vmatprep.subr.mxu0 0.0
    %2067 = vmatpush2.msra.mxu0 0.0
    %2068 = vmatprep.subr.mxu0 0.0
    %2069 = vmatpush2.msra.mxu0 0.0
    %2070 = vmatprep.subr.mxu0 0.0
    %2071 = vmatpush2.msra.mxu0 0.0
    %2072 = vmatprep.subr.mxu0 0.0
    %2073 = vmatpush2.msra.mxu0 0.0
    %2074 = vmatprep.subr.mxu0 0.0
    %2075 = vmatpush2.msra.mxu0 0.0
    %2076 = vmatprep.subr.mxu0 0.0
    %2077 = vmatpush2.msra.mxu0 0.0
    %2078 = vmatprep.subr.mxu0 0.0
    %2079 = vmatpush2.msra.mxu0 0.0
    %2080 = vmatprep.subr.mxu0 0.0
    %2081 = vmatpush2.msra.mxu0 0.0
    %2082 = vmatprep.subr.mxu0 0.0
    %2083 = vmatpush2.msra.mxu0 0.0
    %2084 = vmatprep.subr.mxu0 0.0
    %2085 = vmatpush2.msra.mxu0 0.0
    %2086 = vmatprep.subr.mxu0 0.0
    %2087 = vmatpush2.msra.mxu0 0.0
    %2088 = vmatprep.subr.mxu0 0.0
    %2089 = vmatpush2.msra.mxu0 0.0
    %2090 = vmatprep.subr.mxu0 0.0
    %2091 = vmatpush2.msra.mxu0 0.0
    %2092 = vmatprep.subr.mxu0 0.0
    %2093 = vmatpush2.msra.mxu0 0.0
    %2094 = vmatprep.subr.mxu0 0.0
    %2095 = vmatpush2.msra.mxu0 0.0
    %2096 = vmatprep.mubr.f32.mxu0 0.0
    %2097 = vmatmul.mubr.f32.gmra.mxu0 %v2027
    %v2098 = vpop.f32.mrf.mxu0
    %v2099 = vadd.f32 %v2025, %v2098
    %v2100 = vpop.f32.mrf.mxu0
    %2101 = vmatprep.mubr.f32.mxu0 0.0
    %2102 = vmatmul.mubr.f32.gmra.mxu0 %v2030
    %v2103 = vpop.f32.mrf.mxu0
    %v2104 = vadd.f32 %v2025, %v2103
    %v2105 = vpop.f32.mrf.mxu0
    %2106 = vdwg.mxu0
    %v2107 = vadd.f32 %v2099, %v1906
    %v2108 = vadd.f32 %v2104, %v1907
    %v2109 = vld [vmem:[%s1188 + $0x6] sm:$0x1]
    %v2110 = vld [vmem:[%s1188 + $0x7] sm:$0x1]
    %v2111 = vsel %vm168, %v2107, 0.0
    %2112 = vadd.xlane.f32.xlu0 %v2111
    %v2113 = vpop.xlane.xlu0 %2112
    %v2114 = vsel %vm168, %v2108, 0.0
    %2115 = vadd.xlane.f32.xlu0 %v2114
    %v2116 = vpop.xlane.xlu0 %2115
    %v2117 = vmul.f32 %v2113, %v175
    %v2118 = vmul.f32 %v2116, %v175
    %v2119 = vsub.f32 %v2107, %v2117
    %v2120 = vsub.f32 %v2108, %v2118
    %v2121 = vmul.f32 %v2119, %v2119
    %v2122 = vmul.f32 %v2120, %v2120
    %v2123 = vsel %vm168, %v2121, 0.0
    %2124 = vadd.xlane.f32.xlu0 %v2123
    %v2125 = vpop.xlane.xlu0 %2124
    %v2126 = vsel %vm168, %v2122, 0.0
    %2127 = vadd.xlane.f32.xlu0 %v2126
    %v2128 = vpop.xlane.xlu0 %2127
    %v2129 = vmul.f32 %v2125, %v175
    %v2130 = vmul.f32 %v2128, %v175
    %v2131 = vadd.f32 %v2129, 1e-12
    %v2132 = vadd.f32 %v2130, 1e-12
    %v2133 = vrsqrt.pop %v2131
    %v2134 = vrsqrt.pop %v2132
    %v2135 = vmul.f32 %v2119, %v2133
    %v2136 = vmul.f32 %v2120, %v2134
    %v2137 = vlaneseq
    %v2138 = vshrl.u32 %v2137, 7
    %v2139 = vsub.s32 0, %v2138
    %v2140 = vrot.slane %v2109, %v2139
    %v2141 = vmul.f32 %v2135, %v2140
    %v2142 = vmul.f32 %v2136, %v2140
    %v2143 = vlaneseq
    %v2144 = vshrl.u32 %v2143, 7
    %v2145 = vsub.s32 0, %v2144
    %v2146 = vrot.slane %v2110, %v2145
    %v2147 = vadd.f32 %v2141, %v2146
    %v2148 = vadd.f32 %v2142, %v2146
    %v2149 = vld [vmem:[%s7] sm:$0xff]
    %v2150 = vld [vmem:[%s7 + $0x8] sm:$0xff]
    %v2151 = vld [vmem:[%s7 + $0x10] sm:$0xff]
    %v2152 = vld [vmem:[%s7 + $0x18] sm:$0xff]
    %v2153 = vld [vmem:[%s7 + $0x20] sm:$0x1]
    %v2154 = vlaneseq
    %v2155 = vshrl.u32 %v2154, 7
    %v2156 = vsub.s32 0, %v2155
    %v2157 = vrot.slane %v2153, %v2156
    %v2159 = vsel %vm168, %v2147, 0
    %v2162 = vsel %vm168, %v2148, 0
    %2164 = vmatprep.subr.mxu0 0.0
    %2165 = vmatpush1.msra.mxu0 0.0
    %2166 = vmatprep.subr.mxu0 0.0
    %2167 = vmatpush1.msra.mxu0 0.0
    %2168 = vmatprep.subr.mxu0 0.0
    %2169 = vmatpush1.msra.mxu0 0.0
    %2170 = vmatprep.subr.mxu0 0.0
    %2171 = vmatpush1.msra.mxu0 0.0
    %2172 = vmatprep.subr.mxu0 0.0
    %2173 = vmatpush1.msra.mxu0 0.0
    %2174 = vmatprep.subr.mxu0 0.0
    %2175 = vmatpush1.msra.mxu0 0.0
    %2176 = vmatprep.subr.mxu0 0.0
    %2177 = vmatpush1.msra.mxu0 0.0
    %2178 = vmatprep.subr.mxu0 0.0
    %2179 = vmatpush1.msra.mxu0 0.0
    %2180 = vmatprep.subr.mxu0 0.0
    %2181 = vmatpush1.msra.mxu0 0.0
    %2182 = vmatprep.subr.mxu0 0.0
    %2183 = vmatpush1.msra.mxu0 0.0
    %2184 = vmatprep.subr.mxu0 0.0
    %2185 = vmatpush1.msra.mxu0 0.0
    %2186 = vmatprep.subr.mxu0 0.0
    %2187 = vmatpush1.msra.mxu0 0.0
    %2188 = vmatprep.subr.mxu0 0.0
    %2189 = vmatpush1.msra.mxu0 %v2152
    %2190 = vmatprep.subr.mxu0 0.0
    %2191 = vmatpush1.msra.mxu0 %v2151
    %2192 = vmatprep.subr.mxu0 0.0
    %2193 = vmatpush1.msra.mxu0 %v2150
    %2194 = vmatprep.subr.mxu0 0.0
    %2195 = vmatpush1.msra.mxu0 %v2149
    %2196 = vmatprep.subr.mxu0 0.0
    %2197 = vmatpush2.msra.mxu0 0.0
    %2198 = vmatprep.subr.mxu0 0.0
    %2199 = vmatpush2.msra.mxu0 0.0
    %2200 = vmatprep.subr.mxu0 0.0
    %2201 = vmatpush2.msra.mxu0 0.0
    %2202 = vmatprep.subr.mxu0 0.0
    %2203 = vmatpush2.msra.mxu0 0.0
    %2204 = vmatprep.subr.mxu0 0.0
    %2205 = vmatpush2.msra.mxu0 0.0
    %2206 = vmatprep.subr.mxu0 0.0
    %2207 = vmatpush2.msra.mxu0 0.0
    %2208 = vmatprep.subr.mxu0 0.0
    %2209 = vmatpush2.msra.mxu0 0.0
    %2210 = vmatprep.subr.mxu0 0.0
    %2211 = vmatpush2.msra.mxu0 0.0
    %2212 = vmatprep.subr.mxu0 0.0
    %2213 = vmatpush2.msra.mxu0 0.0
    %2214 = vmatprep.subr.mxu0 0.0
    %2215 = vmatpush2.msra.mxu0 0.0
    %2216 = vmatprep.subr.mxu0 0.0
    %2217 = vmatpush2.msra.mxu0 0.0
    %2218 = vmatprep.subr.mxu0 0.0
    %2219 = vmatpush2.msra.mxu0 0.0
    %2220 = vmatprep.subr.mxu0 0.0
    %2221 = vmatpush2.msra.mxu0 0.0
    %2222 = vmatprep.subr.mxu0 0.0
    %2223 = vmatpush2.msra.mxu0 0.0
    %2224 = vmatprep.subr.mxu0 0.0
    %2225 = vmatpush2.msra.mxu0 0.0
    %2226 = vmatprep.subr.mxu0 0.0
    %2227 = vmatpush2.msra.mxu0 0.0
    %2228 = vmatprep.mubr.f32.mxu0 0.0
    %2229 = vmatmul.mubr.f32.gmra.mxu0 %v2159
    %v2230 = vpop.f32.mrf.mxu0
    %v2231 = vadd.f32 %v2157, %v2230
    %v2232 = vpop.f32.mrf.mxu0
    %2233 = vmatprep.mubr.f32.mxu0 0.0
    %2234 = vmatmul.mubr.f32.gmra.mxu0 %v2162
    %v2235 = vpop.f32.mrf.mxu0
    %v2236 = vadd.f32 %v2157, %v2235
    %v2237 = vpop.f32.mrf.mxu0
    %2238 = vdwg.mxu0
    %2239 = vmax.xlane.f32.xlu0 %v2231
    %v2240 = vpop.xlane.xlu0 %2239
    %2241 = vmax.xlane.f32.xlu0 %v2236
    %v2242 = vpop.xlane.xlu0 %2241
    %vm2243 = vcmp.eq.f32.partialorder %v2231, %v2240
    %vm2244 = vcmp.eq.f32.partialorder %v2236, %v2242
    %v2245 = vsel %vm2243, %v60, 128
    %v2246 = vsel %vm2244, %v60, 128
    %v2247 = vand.u32 %v2245, 65535
    %v2248 = vshra.s32 %v2245, 16
    %v2249 = vcvt.s32.f32 %v2247
    %v2250 = vcvt.s32.f32 %v2248
    %2251 = vmin.xlane.f32.xlu0 %v2250
    %v2252 = vpop.xlane.xlu0 %2251
    %vm2253 = vcmp.eq.f32.partialorder %v2250, %v2252
    %v2254 = vsel %vm2253, %v2249, inf
    %2255 = vmin.xlane.f32.xlu0 %v2254
    %v2256 = vpop.xlane.xlu0 %2255
    %v2257 = vcvt.f32.s32 %v2256
    %v2258 = vcvt.f32.s32 %v2252
    %v2259 = vshll.u32 %v2258, 16
    %v2260 = vadd.s32 %v2259, %v2257
    %v2261 = vand.u32 %v2246, 65535
    %v2262 = vshra.s32 %v2246, 16
    %v2263 = vcvt.s32.f32 %v2261
    %v2264 = vcvt.s32.f32 %v2262
    %2265 = vmin.xlane.f32.xlu0 %v2264
    %v2266 = vpop.xlane.xlu0 %2265
    %vm2267 = vcmp.eq.f32.partialorder %v2264, %v2266
    %v2268 = vsel %vm2267, %v2263, inf
    %2269 = vmin.xlane.f32.xlu0 %v2268
    %v2270 = vpop.xlane.xlu0 %2269
    %v2271 = vcvt.f32.s32 %v2270
    %v2272 = vcvt.f32.s32 %v2266
    %v2273 = vshll.u32 %v2272, 16
    %v2274 = vadd.s32 %v2273, %v2271
    %vm2275 = vcmp.eq.s32.totalorder %v57, 0
    %vm2276 = vcmp.eq.s32.totalorder %v58, 0
    %v2277 = vsel %vm2275, 0, %v2260
    %v2278 = vsel %vm2276, 0, %v2274
    %v2279 = vsub.f32 %v2231, %v2240
    %v2280 = vsub.f32 %v2236, %v2242
    %v2281 = vmul.f32 %v2279, 1.442695
    %v2282 = vpow.pop %v2281
    %v2283 = vmul.f32 %v2280, 1.442695
    %v2284 = vpow.pop %v2283
    %2285 = vadd.xlane.f32.xlu0 %v2282
    %v2286 = vpop.xlane.xlu0 %2285
    %2287 = vadd.xlane.f32.xlu0 %v2284
    %v2288 = vpop.xlane.xlu0 %2287
    %v2289 = vlog2.pop %v2286
    %v2290 = vmul.f32 %v2289, 0.6931472
    %v2291 = vlog2.pop %v2288
    %v2292 = vmul.f32 %v2291, 0.6931472
    %v2293 = vadd.f32 %v2240, %v2290
    %v2294 = vadd.f32 %v2242, %v2292
    %2295 = vset.pattern.permute.xlu0 1
    %2296 = vperm.xlu0 %2295, %v57
    %v2297 = vpop.permute.xlu0 %2296
    %2298 = vset.pattern.permute.xlu0 1
    %2299 = vperm.xlu0 %2298, %v58
    %v2300 = vpop.permute.xlu0 %2299
    %vm2301 = vcmp.eq.s32.totalorder %v60, %v2297
    %vm2302 = vcmp.eq.s32.totalorder %v60, %v2300
    %v2303 = vsel %vm2301, %v2231, 0.0
    %v2304 = vsel %vm2302, %v2236, 0.0
    %2305 = vadd.xlane.f32.xlu0 %v2303
    %v2306 = vpop.xlane.xlu0 %2305
    %2307 = vadd.xlane.f32.xlu0 %v2304
    %v2308 = vpop.xlane.xlu0 %2307
    %vm2309 = vcmp.ne.s32.totalorder %v57, 0
    %vm2310 = vcmp.ne.s32.totalorder %v58, 0
    %v2311 = vsel %vm2309, 1, 0
    %v2312 = vsel %vm2310, 1, 0
    %v2313 = vcvt.s32.f32 %v2311
    %v2314 = vcvt.s32.f32 %v2312
    %v2315 = vsub.f32 %v2293, %v2306
    %v2316 = vsub.f32 %v2294, %v2308
    %v2317 = vmul.f32 %v2315, %v2313
    %v2318 = vmul.f32 %v2316, %v2314
    %vm2319 = vcmask 15368
    %v2320 = vsel %vm2319, %v2317, 0.0
    %v2321 = vsel %vm2319, %v2318, 0.0
    %v2322 = vadd.f32 %v2320, %v2321
    %v2323 = vrot.slane %v2322, 4
    %v2324 = vadd.f32 %v2322, %v2323
    %v2325 = vrot.slane %v2324, 2
    %v2326 = vadd.f32 %v2324, %v2325
    %v2327 = vrot.slane %v2326, 1
    %v2328 = vadd.f32 %v2326, %v2327
    %v2329 = vsel %vm2319, %v2313, 0.0
    %v2330 = vsel %vm2319, %v2314, 0.0
    %v2331 = vadd.f32 %v2329, %v2330
    %v2332 = vrot.slane %v2331, 4
    %v2333 = vadd.f32 %v2331, %v2332
    %v2334 = vrot.slane %v2333, 2
    %v2335 = vadd.f32 %v2333, %v2334
    %v2336 = vrot.slane %v2335, 1
    %v2337 = vadd.f32 %v2335, %v2336
    %v2338 = vlaneseq
    %v2339 = vshrl.u32 %v2338, 7
    %v2340 = vadd.s32 %v2339, 8
    %vm2341 = vcmp.eq.s32.totalorder %v60, 0
    %v2342 = vcvt.s32.f32 %v2277
    %v2343 = vcvt.s32.f32 %v2278
    %2345 = vset.pattern.permute.xlu0 2
    %2346 = vperm.xlu0 %2345, %v2342
    %v2347 = vpop.permute.xlu0 %2346
    %2350 = vset.pattern.permute.xlu0 2
    %2351 = vperm.xlu0 %2350, %v2343
    %v2352 = vpop.permute.xlu0 %2351
    %v2354 = vsel %vm2341, %v2347, 0.0
    %v2355 = vsel %vm2341, %v2352, 0.0
    %vm2356 = vcmp.eq.s32.totalorder %v2339, 0
    %vm2357 = vcmp.eq.s32.totalorder %v2340, 0
    %vm2358 = vcmp.eq.s32.totalorder %v60, 1
    %vm2359 = vmand %vm2356, %vm2358
    %vm2360 = vmand %vm2357, %vm2358
    %2362 = vset.pattern.permute.xlu0 1
    %2363 = vperm.xlu0 %2362, %v2328
    %v2364 = vpop.permute.xlu0 %2363
    %v2366 = vsel %vm2359, %v2364, 0.0
    %v2367 = vsel %vm2360, %v2364, 0.0
    %v2368 = vadd.f32 %v2354, %v2366
    %v2369 = vadd.f32 %v2355, %v2367
    %vm2370 = vcmp.eq.s32.totalorder %v60, 2
    %vm2371 = vmand %vm2356, %vm2370
    %vm2372 = vmand %vm2357, %vm2370
    %2374 = vset.pattern.permute.xlu0 1
    %2375 = vperm.xlu0 %2374, %v2337
    %v2376 = vpop.permute.xlu0 %2375
    %v2378 = vsel %vm2371, %v2376, 0.0
    %v2379 = vsel %vm2372, %v2376, 0.0
    %v2380 = vadd.f32 %v2368, %v2378
    %v2381 = vadd.f32 %v2369, %v2379
    %2382 = vst [vmem:[%s8] sm:$0xff] %v2380
    %2383 = vst [vmem:[%s8 + $0x8] sm:$0xff] %v2381
    // Predicated region
    $region42: #{spell_check_bert_forward.1} parent=1 // pred_check
      _
    $region43: #{spell_check_bert_forward.1} parent=1 // pred_check_branch
      %2385 = sbr.rel (0) target = $region45
    $region44: #{spell_check_bert_forward.1} parent=1 // pred_region
      _
    $region45: #{spell_check_bert_forward.1} parent=1 // pred_fallthru
      _
    // Predicated region
    $region46: #{spell_check_bert_forward.1} parent=1 // pred_check
      _
    $region47: #{spell_check_bert_forward.1} parent=1 // pred_check_branch
      %2387 = sbr.rel (0) target = $region49
    $region48: #{spell_check_bert_forward.1} parent=1 // pred_region
      _
    $region49: #{spell_check_bert_forward.1} parent=1 // pred_fallthru
      _
    %2388 = vsyncpa [#allocation3], 1
    %2389 = vsyncpa [#allocation5], 1

</llo_original>
